<compile_context>
chip_gen: v7x
topology: tpu7x:2x2x1
jax: 0.10.0
libtpu: 0.0.40
codegen_flags: <defaults>
</compile_context>

<pallas_src>
import functools

import jax
import jax.numpy as jnp
import numpy as np
from jax.experimental import pallas as pl
from jax.experimental.pallas import tpu as pltpu

CNN_FEATURES = 128        # stands in for CFG.cnn_features
HEAD_CHANNELS = 1280      # EfficientNet-b0 _fc.in_features (head conv width)
STEM_CHANNELS = 32        # EfficientNet-b0 stem output channels
MAP_CHANNELS = 3          # self.map = Conv2d(4, 3, kernel_size=1)
IN_CHANNELS = 4
HEAD_TILE = 640           # head channels per in-kernel chunk (1280 = 2 * 640)
assert HEAD_CHANNELS % HEAD_TILE == 0


# ---------------------------------------------------------------------------
# Fused Pallas kernel: one grid step == one (or the whole) batch, end to end.
# ---------------------------------------------------------------------------
def _cnn_fused_kernel(px_ref, maskb_ref, wblk_ref, wstem_ref, bstem_ref,
                      whead_ref, bhead_ref, wfc_ref, bfc_ref, o_ref,
                      *, head_tile, rows_per_img):
    """Whole CNN forward; only (n_imgs, CNN_FEATURES) hits HBM per step."""
    px = px_ref[0]                                             # (M, 9*Cin) bf16
    M = px.shape[0]
    n_imgs = M // rows_per_img

    # 1) F.relu(self.map(x)): 1x1 conv applied per im2col tap through the
    #    block-diagonal weight kron(I9, w_map); pad mask is pre-folded into
    #    the bias (mask_bias), so masked taps stay exactly 0 after the relu.
    h = jnp.dot(px, wblk_ref[...], preferred_element_type=jnp.float32)
    h = jnp.maximum(h + maskb_ref[...], 0.0)                   # (M, 27) f32
    h = h.astype(wstem_ref.dtype)                              # bf16 for MXU

    # 2) EfficientNet stem: 3x3 stride-2 conv as an im2col matmul, + swish.
    s = jnp.dot(h, wstem_ref[...], preferred_element_type=jnp.float32)
    s = s + bstem_ref[...]
    s = s * jax.nn.sigmoid(s)                                  # (M, 32) f32
    s = s.astype(whead_ref.dtype)                              # bf16 for MXU

    # TODO(synk): EfficientNet-b0's 16 MBConv blocks (depthwise conv + SE) are
    #             not implemented; the head consumes the 32 stem channels.

    # 3+4+5) head 1x1 conv (32->1280) + swish, chunked over the 1280 head
    #        channels; the global average pool (sum over rows) is applied
    #        BEFORE the fc matmul (mean_rows(H) @ Wfc == mean_rows(H @ Wfc)),
    #        so the fc only ever sees (n_imgs, head_tile) pooled rows and the
    #        (M, 1280) head activation never materializes.
    acc = jnp.zeros((n_imgs, o_ref.shape[-1]), jnp.float32)
    n_chunks = whead_ref.shape[1] // head_tile
    for t in range(n_chunks):                                  # static unroll (2)
        lo = t * head_tile
        hc = jnp.dot(s, whead_ref[:, lo:lo + head_tile],
                     preferred_element_type=jnp.float32)
        hc = hc + bhead_ref[:, lo:lo + head_tile]
        hc = hc * jax.nn.sigmoid(hc)                           # swish kept in f32
        if n_imgs == 1:
            pooled = jnp.sum(hc, axis=0, keepdims=True)        # (1, head_tile)
        else:
            pooled = jnp.sum(hc.reshape(n_imgs, rows_per_img, head_tile),
                             axis=1)                           # (n_imgs, head_tile)
        acc = acc + jnp.dot(pooled.astype(wfc_ref.dtype),
                            wfc_ref[lo:lo + head_tile, :],
                            preferred_element_type=jnp.float32)
    inv_rows = 1.0 / float(rows_per_img)
    o_ref[0] = (acc * inv_rows + bfc_ref[...]).astype(o_ref.dtype)


# ---------------------------------------------------------------------------
# Wrapper-side layout helpers (all tiny, operate on the raw 4-channel input)
# ---------------------------------------------------------------------------
def _same_pad(size, k=3, s=2):
    """TF SAME padding: returns (out_size, pad_before, pad_after)."""
    out = -(-size // s)
    pad = max((out - 1) * s + k - size, 0)
    return out, pad // 2, pad - pad // 2


def _stem_pad_mask(H, W, Ho, Wo, pad_top, pad_left, c_out):
    """(Ho*Wo, 9*c_out) mask: 1 where the im2col tap reads a real pixel."""
    ho = np.arange(Ho)[:, None, None, None]
    wo = np.arange(Wo)[None, :, None, None]
    kh = np.arange(3)[None, None, :, None]
    kw = np.arange(3)[None, None, None, :]
    r = 2 * ho + kh - pad_top
    c = 2 * wo + kw - pad_left
    valid = (r >= 0) & (r < H) & (c >= 0) & (c < W)            # (Ho, Wo, 3, 3)
    m = valid.reshape(Ho * Wo, 9).astype(np.float32)
    return np.repeat(m, c_out, axis=1)                         # tap-major, ch-minor


def _batch_per_step(n_batch):
    """Grid strategy per chip generation (perf only; both paths are exact).

    Single-TensorCore chips (v5e/v6e): collapse the batch into the row dim so
    one grid step sees M = N*rows (fills MXU rows, no serial 2-step grid).
    Multi-TC chips (v7x) or unknown: one batch element per "parallel" grid
    step so TensorCores each take one.
    """
    try:
        kind = jax.devices()[0].device_kind.lower()
    except Exception:
        return 1
    single_tc = any(t in kind for t in ("v5e", "v5 lite", "v5litepod",
                                        "v6e", "v6 lite"))
    return n_batch if single_tc else 1


# ---------------------------------------------------------------------------
# Parameters (deterministic synthetic init; BatchNorm folded into conv weights)
# ---------------------------------------------------------------------------
def init_params(key):
    ks = jax.random.split(key, 8)
    s = 0.05
    return {
        # nn.Conv2d(4, 3, kernel_size=1): weight stored as (Cin, Cout)
        "w_map": jax.random.normal(ks[0], (IN_CHANNELS, MAP_CHANNELS), jnp.float32) * s,
        "b_map": jax.random.normal(ks[1], (MAP_CHANNELS,), jnp.float32) * s,
        # EfficientNet stem: 3x3 s2 conv, 3 -> 32; (kh, kw, cin) tap-major rows
        "w_stem": jax.random.normal(ks[2], (9 * MAP_CHANNELS, STEM_CHANNELS), jnp.float32) * s,
        "b_stem": jax.random.normal(ks[3], (STEM_CHANNELS,), jnp.float32) * s,
        # head 1x1 conv to 1280 (bf16 resident weight; MBConv blocks omitted)
        "w_head": (jax.random.normal(ks[4], (STEM_CHANNELS, HEAD_CHANNELS), jnp.float32) * s
                   ).astype(jnp.bfloat16),
        "b_head": jax.random.normal(ks[5], (HEAD_CHANNELS,), jnp.float32) * s,
        # replaced _fc: Linear(1280, CNN_FEATURES) (bf16 weight, f32 bias)
        "w_fc": (jax.random.normal(ks[6], (HEAD_CHANNELS, CNN_FEATURES), jnp.float32) * s
                 ).astype(jnp.bfloat16),
        "b_fc": jax.random.normal(ks[7], (CNN_FEATURES,), jnp.float32) * s,
    }


# ---------------------------------------------------------------------------
# Forward pass: one fused pallas_call; wrapper does only tiny layout prep.
# ---------------------------------------------------------------------------
@functools.partial(jax.jit, static_argnames=("batch_per_step",))
def _cnn_forward_impl(x_nchw, params, batch_per_step):
    N, C, H, W = x_nchw.shape
    Ho, pt, pb = _same_pad(H)
    Wo, pleft, pr = _same_pad(W)
    rows = Ho * Wo
    nb = batch_per_step
    n_steps = N // nb                                   # nb is 1 or N

    # NCHW -> NHWC, TF-SAME pad, im2col of the RAW input (layout only; the 1x1
    # map conv commutes with patch extraction and is applied in-kernel).
    x = jnp.transpose(x_nchw, (0, 2, 3, 1)).astype(jnp.float32)
    xp = jnp.pad(x, ((0, 0), (pt, pb), (pleft, pr), (0, 0)))
    taps = [xp[:, kh:kh + 2 * Ho:2, kw:kw + 2 * Wo:2, :]
            for kh in range(3) for kw in range(3)]
    px = jnp.concatenate(taps, axis=-1).reshape(N, rows, 9 * C)
    px = px.reshape(n_steps, nb * rows, 9 * C).astype(jnp.bfloat16)

    # Static-shape constants / weight re-layouts (tiny).
    mask = jnp.asarray(_stem_pad_mask(H, W, Ho, Wo, pt, pleft, MAP_CHANNELS))
    b_blk = jnp.tile(params["b_map"], 9)                          # (27,)
    mask_bias = jnp.tile(mask * b_blk[None, :], (nb, 1))          # (nb*rows, 27) f32
    w_blk = jnp.kron(jnp.eye(9, dtype=jnp.float32),
                     params["w_map"]).astype(jnp.bfloat16)        # (36, 27) bf16
    w_stem = params["w_stem"].astype(jnp.bfloat16)                # (27, 32) bf16

    kernel = functools.partial(_cnn_fused_kernel,
                               head_tile=HEAD_TILE, rows_per_img=rows)
    out = pl.pallas_call(
        kernel,
        out_shape=jax.ShapeDtypeStruct((n_steps, nb, CNN_FEATURES), jnp.float32),
        grid=(n_steps,),
        in_specs=[
            pl.BlockSpec((1, nb * rows, 9 * C), lambda b: (b, 0, 0)),  # patches
            pl.BlockSpec(mask_bias.shape, lambda b: (0, 0)),           # mask*bias
            pl.BlockSpec(w_blk.shape, lambda b: (0, 0)),               # kron(I9, w_map)
            pl.BlockSpec(w_stem.shape, lambda b: (0, 0)),
            pl.BlockSpec((1, STEM_CHANNELS), lambda b: (0, 0)),
            pl.BlockSpec(params["w_head"].shape, lambda b: (0, 0)),
            pl.BlockSpec((1, HEAD_CHANNELS), lambda b: (0, 0)),
            pl.BlockSpec(params["w_fc"].shape, lambda b: (0, 0)),
            pl.BlockSpec((1, CNN_FEATURES), lambda b: (0, 0)),
        ],
        out_specs=pl.BlockSpec((1, nb, CNN_FEATURES), lambda b: (b, 0, 0)),
        compiler_params=pltpu.CompilerParams(
            dimension_semantics=("parallel",)),   # v7x: batch across the 2 TCs
    )(px, mask_bias, w_blk, w_stem,
      params["b_stem"].reshape(1, -1),
      params["w_head"], params["b_head"].reshape(1, -1),
      params["w_fc"], params["b_fc"].reshape(1, -1))
    return out.reshape(N, CNN_FEATURES)


def cnn_forward(x_nchw, params):
    return _cnn_forward_impl(x_nchw, params,
                             batch_per_step=_batch_per_step(x_nchw.shape[0]))


if __name__ == "__main__":
    key = jax.random.PRNGKey(0)
    k_x, k_p = jax.random.split(key)
    x = jax.random.normal(k_x, (2, IN_CHANNELS, 16, 16), jnp.float32)  # NCHW input
    params = init_params(k_p)

    out = cnn_forward(x, params)
    out = jax.block_until_ready(out)
    assert out.shape == (2, CNN_FEATURES), out.shape
    assert jnp.all(jnp.isfinite(out))
    print("KERNEL_OK")
</pallas_src>

<mosaic_0001>
module attributes {stable_mosaic.version = 11 : i64} {
  func.func @_cnn_fused_kernel(%arg0: i32, %arg1: memref<1x64x36xbf16, #tpu.memory_space<vmem>>, %arg2: memref<64x27xf32, #tpu.memory_space<vmem>>, %arg3: memref<36x27xbf16, #tpu.memory_space<vmem>>, %arg4: memref<27x32xbf16, #tpu.memory_space<vmem>>, %arg5: memref<1x32xf32, #tpu.memory_space<vmem>>, %arg6: memref<32x1280xbf16, #tpu.memory_space<vmem>>, %arg7: memref<1x1280xf32, #tpu.memory_space<vmem>>, %arg8: memref<1280x128xbf16, #tpu.memory_space<vmem>>, %arg9: memref<1x128xf32, #tpu.memory_space<vmem>>, %arg10: memref<1x1x128xf32, #tpu.memory_space<vmem>>) attributes {dimension_semantics = [#tpu.dimension_semantics<parallel>], iteration_bounds = array<i64: 2>, scalar_prefetch = 0 : i64, scratch_operands = 0 : i64, tpu.core_type = #tpu.core_type<tc>, window_params = [{transform_indices = @transform_0, window_bounds = array<i64: 1, 64, 36>}, {pipeline_mode = #tpu.pipeline_mode<synchronous>, transform_indices = @transform_1, window_bounds = array<i64: 64, 27>}, {pipeline_mode = #tpu.pipeline_mode<synchronous>, transform_indices = @transform_2, window_bounds = array<i64: 36, 27>}, {pipeline_mode = #tpu.pipeline_mode<synchronous>, transform_indices = @transform_3, window_bounds = array<i64: 27, 32>}, {pipeline_mode = #tpu.pipeline_mode<synchronous>, transform_indices = @transform_4, window_bounds = array<i64: 1, 32>}, {pipeline_mode = #tpu.pipeline_mode<synchronous>, transform_indices = @transform_5, window_bounds = array<i64: 32, 1280>}, {pipeline_mode = #tpu.pipeline_mode<synchronous>, transform_indices = @transform_6, window_bounds = array<i64: 1, 1280>}, {pipeline_mode = #tpu.pipeline_mode<synchronous>, transform_indices = @transform_7, window_bounds = array<i64: 1280, 128>}, {pipeline_mode = #tpu.pipeline_mode<synchronous>, transform_indices = @transform_8, window_bounds = array<i64: 1, 128>}, {transform_indices = @transform_9, window_bounds = array<i64: 1, 1, 128>}]} {
    %c0 = arith.constant 0 : index
    %c0_0 = arith.constant 0 : index
    %c0_1 = arith.constant 0 : index
    %0 = vector.load %arg1[%c0, %c0_0, %c0_1] : memref<1x64x36xbf16, #tpu.memory_space<vmem>>, vector<1x64x36xbf16>
    %1 = vector.shape_cast %0 : vector<1x64x36xbf16> to vector<64x36xbf16>
    %c0_2 = arith.constant 0 : index
    %c0_3 = arith.constant 0 : index
    %2 = vector.load %arg3[%c0_2, %c0_3] : memref<36x27xbf16, #tpu.memory_space<vmem>>, vector<36x27xbf16>
    %cst = arith.constant dense<0.000000e+00> : vector<64x27xf32>
    %3 = tpu.matmul %1, %2, %cst {dimension_numbers = #tpu.dot_dimension_numbers<[1], [0], [0], [1], [0, 0, 1, 1], [], []>} : vector<64x36xbf16>, vector<36x27xbf16>, vector<64x27xf32> -> vector<64x27xf32>
    %c0_4 = arith.constant 0 : index
    %c0_5 = arith.constant 0 : index
    %4 = vector.load %arg2[%c0_4, %c0_5] : memref<64x27xf32, #tpu.memory_space<vmem>>, vector<64x27xf32>
    %5 = arith.addf %3, %4 : vector<64x27xf32>
    %cst_6 = arith.constant 0.000000e+00 : f32
    %6 = vector.broadcast %cst_6 : f32 to vector<64x27xf32>
    %7 = arith.maximumf %5, %6 : vector<64x27xf32>
    %8 = arith.truncf %7 : vector<64x27xf32> to vector<64x27xbf16>
    %c0_7 = arith.constant 0 : index
    %c0_8 = arith.constant 0 : index
    %9 = vector.load %arg4[%c0_7, %c0_8] : memref<27x32xbf16, #tpu.memory_space<vmem>>, vector<27x32xbf16>
    %cst_9 = arith.constant dense<0.000000e+00> : vector<64x32xf32>
    %10 = tpu.matmul %8, %9, %cst_9 {dimension_numbers = #tpu.dot_dimension_numbers<[1], [0], [0], [1], [0, 0, 1, 1], [], []>} : vector<64x27xbf16>, vector<27x32xbf16>, vector<64x32xf32> -> vector<64x32xf32>
    %c0_10 = arith.constant 0 : index
    %c0_11 = arith.constant 0 : index
    %11 = vector.load %arg5[%c0_10, %c0_11] : memref<1x32xf32, #tpu.memory_space<vmem>>, vector<1x32xf32>
    %12 = vector.broadcast %11 : vector<1x32xf32> to vector<64x32xf32>
    %13 = arith.addf %10, %12 : vector<64x32xf32>
    %14 = arith.negf %13 : vector<64x32xf32>
    %15 = math.exp %14 : vector<64x32xf32>
    %cst_12 = arith.constant 1.000000e+00 : f32
    %16 = vector.broadcast %cst_12 : f32 to vector<64x32xf32>
    %17 = arith.addf %16, %15 : vector<64x32xf32>
    %18 = arith.divf %16, %17 : vector<64x32xf32>
    %19 = arith.mulf %13, %18 : vector<64x32xf32>
    %20 = arith.truncf %19 : vector<64x32xf32> to vector<64x32xbf16>
    %cst_13 = arith.constant 0.000000e+00 : f32
    %21 = vector.broadcast %cst_13 : f32 to vector<1x128xf32>
    %c0_14 = arith.constant 0 : index
    %c0_15 = arith.constant 0 : index
    %22 = vector.load %arg6[%c0_14, %c0_15] : memref<32x1280xbf16, #tpu.memory_space<vmem>>, vector<32x640xbf16>
    %cst_16 = arith.constant dense<0.000000e+00> : vector<64x640xf32>
    %23 = tpu.matmul %20, %22, %cst_16 {dimension_numbers = #tpu.dot_dimension_numbers<[1], [0], [0], [1], [0, 0, 1, 1], [], []>} : vector<64x32xbf16>, vector<32x640xbf16>, vector<64x640xf32> -> vector<64x640xf32>
    %c0_17 = arith.constant 0 : index
    %c0_18 = arith.constant 0 : index
    %24 = vector.load %arg7[%c0_17, %c0_18] : memref<1x1280xf32, #tpu.memory_space<vmem>>, vector<1x640xf32>
    %25 = vector.broadcast %24 : vector<1x640xf32> to vector<64x640xf32>
    %26 = arith.addf %23, %25 : vector<64x640xf32>
    %27 = arith.negf %26 : vector<64x640xf32>
    %28 = math.exp %27 : vector<64x640xf32>
    %cst_19 = arith.constant 1.000000e+00 : f32
    %29 = vector.broadcast %cst_19 : f32 to vector<64x640xf32>
    %30 = arith.addf %29, %28 : vector<64x640xf32>
    %31 = arith.divf %29, %30 : vector<64x640xf32>
    %32 = arith.mulf %26, %31 : vector<64x640xf32>
    %cst_20 = arith.constant dense<0.000000e+00> : vector<640xf32>
    %33 = vector.multi_reduction <add>, %32, %cst_20 [0] : vector<64x640xf32> to vector<640xf32>
    %34 = vector.shape_cast %33 : vector<640xf32> to vector<1x640xf32>
    %35 = arith.truncf %34 : vector<1x640xf32> to vector<1x640xbf16>
    %c0_21 = arith.constant 0 : index
    %c0_22 = arith.constant 0 : index
    %36 = vector.load %arg8[%c0_21, %c0_22] : memref<1280x128xbf16, #tpu.memory_space<vmem>>, vector<640x128xbf16>
    %cst_23 = arith.constant dense<0.000000e+00> : vector<1x128xf32>
    %37 = tpu.matmul %35, %36, %cst_23 {dimension_numbers = #tpu.dot_dimension_numbers<[1], [0], [0], [1], [0, 0, 1, 1], [], []>} : vector<1x640xbf16>, vector<640x128xbf16>, vector<1x128xf32> -> vector<1x128xf32>
    %38 = arith.addf %21, %37 : vector<1x128xf32>
    %c0_24 = arith.constant 0 : index
    %c640 = arith.constant 640 : index
    %39 = vector.load %arg6[%c0_24, %c640] : memref<32x1280xbf16, #tpu.memory_space<vmem>>, vector<32x640xbf16>
    %cst_25 = arith.constant dense<0.000000e+00> : vector<64x640xf32>
    %40 = tpu.matmul %20, %39, %cst_25 {dimension_numbers = #tpu.dot_dimension_numbers<[1], [0], [0], [1], [0, 0, 1, 1], [], []>} : vector<64x32xbf16>, vector<32x640xbf16>, vector<64x640xf32> -> vector<64x640xf32>
    %c0_26 = arith.constant 0 : index
    %c640_27 = arith.constant 640 : index
    %41 = vector.load %arg7[%c0_26, %c640_27] : memref<1x1280xf32, #tpu.memory_space<vmem>>, vector<1x640xf32>
    %42 = vector.broadcast %41 : vector<1x640xf32> to vector<64x640xf32>
    %43 = arith.addf %40, %42 : vector<64x640xf32>
    %44 = arith.negf %43 : vector<64x640xf32>
    %45 = math.exp %44 : vector<64x640xf32>
    %cst_28 = arith.constant 1.000000e+00 : f32
    %46 = vector.broadcast %cst_28 : f32 to vector<64x640xf32>
    %47 = arith.addf %46, %45 : vector<64x640xf32>
    %48 = arith.divf %46, %47 : vector<64x640xf32>
    %49 = arith.mulf %43, %48 : vector<64x640xf32>
    %cst_29 = arith.constant dense<0.000000e+00> : vector<640xf32>
    %50 = vector.multi_reduction <add>, %49, %cst_29 [0] : vector<64x640xf32> to vector<640xf32>
    %51 = vector.shape_cast %50 : vector<640xf32> to vector<1x640xf32>
    %52 = arith.truncf %51 : vector<1x640xf32> to vector<1x640xbf16>
    %c640_30 = arith.constant 640 : index
    %c0_31 = arith.constant 0 : index
    %53 = vector.load %arg8[%c640_30, %c0_31] : memref<1280x128xbf16, #tpu.memory_space<vmem>>, vector<640x128xbf16>
    %cst_32 = arith.constant dense<0.000000e+00> : vector<1x128xf32>
    %54 = tpu.matmul %52, %53, %cst_32 {dimension_numbers = #tpu.dot_dimension_numbers<[1], [0], [0], [1], [0, 0, 1, 1], [], []>} : vector<1x640xbf16>, vector<640x128xbf16>, vector<1x128xf32> -> vector<1x128xf32>
    %55 = arith.addf %38, %54 : vector<1x128xf32>
    %cst_33 = arith.constant 1.562500e-02 : f32
    %56 = vector.broadcast %cst_33 : f32 to vector<1x128xf32>
    %57 = arith.mulf %55, %56 : vector<1x128xf32>
    %c0_34 = arith.constant 0 : index
    %c0_35 = arith.constant 0 : index
    %58 = vector.load %arg9[%c0_34, %c0_35] : memref<1x128xf32, #tpu.memory_space<vmem>>, vector<1x128xf32>
    %59 = arith.addf %57, %58 : vector<1x128xf32>
    %c0_36 = arith.constant 0 : index
    %c0_37 = arith.constant 0 : index
    %c0_38 = arith.constant 0 : index
    %60 = vector.load %arg10[%c0_36, %c0_37, %c0_38] : memref<1x1x128xf32, #tpu.memory_space<vmem>>, vector<1x1x128xf32>
    %61 = vector.shape_cast %60 : vector<1x1x128xf32> to vector<1x128xf32>
    %62 = vector.shape_cast %59 : vector<1x128xf32> to vector<1x1x128xf32>
    tpu.vector_store %arg10[%c0_36, %c0_37, %c0_38], %62 {strides = array<i32>} : memref<1x1x128xf32, #tpu.memory_space<vmem>>, vector<1x1x128xf32>,
    return
  }
  func.func @transform_0(%arg0: i32) -> (i32, i32, i32) {
    %c0_i32 = arith.constant 0 : i32
    %c0_i32_0 = arith.constant 0 : i32
    %c0_i32_1 = arith.constant 0 : i32
    return %arg0, %c0_i32, %c0_i32_0 : i32, i32, i32
  }
  func.func @transform_1(%arg0: i32) -> (i32, i32) {
    %c0_i32 = arith.constant 0 : i32
    %c0_i32_0 = arith.constant 0 : i32
    %c0_i32_1 = arith.constant 0 : i32
    return %c0_i32, %c0_i32_0 : i32, i32
  }
  func.func @transform_2(%arg0: i32) -> (i32, i32) {
    %c0_i32 = arith.constant 0 : i32
    %c0_i32_0 = arith.constant 0 : i32
    %c0_i32_1 = arith.constant 0 : i32
    return %c0_i32, %c0_i32_0 : i32, i32
  }
  func.func @transform_3(%arg0: i32) -> (i32, i32) {
    %c0_i32 = arith.constant 0 : i32
    %c0_i32_0 = arith.constant 0 : i32
    %c0_i32_1 = arith.constant 0 : i32
    return %c0_i32, %c0_i32_0 : i32, i32
  }
  func.func @transform_4(%arg0: i32) -> (i32, i32) {
    %c0_i32 = arith.constant 0 : i32
    %c0_i32_0 = arith.constant 0 : i32
    %c0_i32_1 = arith.constant 0 : i32
    return %c0_i32, %c0_i32_0 : i32, i32
  }
  func.func @transform_5(%arg0: i32) -> (i32, i32) {
    %c0_i32 = arith.constant 0 : i32
    %c0_i32_0 = arith.constant 0 : i32
    %c0_i32_1 = arith.constant 0 : i32
    return %c0_i32, %c0_i32_0 : i32, i32
  }
  func.func @transform_6(%arg0: i32) -> (i32, i32) {
    %c0_i32 = arith.constant 0 : i32
    %c0_i32_0 = arith.constant 0 : i32
    %c0_i32_1 = arith.constant 0 : i32
    return %c0_i32, %c0_i32_0 : i32, i32
  }
  func.func @transform_7(%arg0: i32) -> (i32, i32) {
    %c0_i32 = arith.constant 0 : i32
    %c0_i32_0 = arith.constant 0 : i32
    %c0_i32_1 = arith.constant 0 : i32
    return %c0_i32, %c0_i32_0 : i32, i32
  }
  func.func @transform_8(%arg0: i32) -> (i32, i32) {
    %c0_i32 = arith.constant 0 : i32
    %c0_i32_0 = arith.constant 0 : i32
    %c0_i32_1 = arith.constant 0 : i32
    return %c0_i32, %c0_i32_0 : i32, i32
  }
  func.func @transform_9(%arg0: i32) -> (i32, i32, i32) {
    %c0_i32 = arith.constant 0 : i32
    %c0_i32_0 = arith.constant 0 : i32
    %c0_i32_1 = arith.constant 0 : i32
    return %arg0, %c0_i32, %c0_i32_0 : i32, i32, i32
  }
}

</mosaic_0001>

<llo_original>
// kernel: tile.8
$region0: #{tile.8}
  #allocation0 [shape = 's32[1]{0}', space=sflag, size = 0x4, scoped, tag = 'scoped memory for tile.8']
  %s0 = inlined_call_operand.vmem [shape: f32[3], index: 0, kind: input, shape index: {}]
  %s1 = inlined_call_operand.vmem [shape: f32[9,3], index: 1, kind: output, shape index: {}]
  // Predicated region
  $region2: #{tile.8} parent=0 // pred_check
    _
  $region3: #{tile.8} parent=0 // pred_check_branch
    %3 = sbr.rel (0) target = $region5
  $region4: #{tile.8} parent=0 // pred_region
    _
  $region5: #{tile.8} parent=0 // pred_fallthru
    _
  %v4 = vld [vmem:[%s0] ss:$0 sm:$0xff]
  %5 = vst [vmem:[%s1] sm:$0xff] %v4
  %s6 = scalar_lea.vmem %s1, 8
  %7 = vst [vmem:[%s6] sm:$0xff] %v4

// kernel: mul.19
$region0: #{mul.19}
  %s0 = inlined_call_operand.vmem [shape: f32[9,3], index: 0, kind: input, shape index: {}]
  %s1 = inlined_call_operand.vmem [shape: f32[27], index: 1, kind: output, shape index: {}]
  $region1: #{mul.19} parent=0
    #allocation0 [shape = 'u8[4096]{0}', space=vmem, size = 0x1000, scoped, tag = 'scoped mem for output reshape']
    %v2 = vld [vmem:[%s0] sm:$0x1]
    %vm3 = vcmask 23552
    %4 = vst.msk [vmem:[#allocation0] sm:$0x1] %vm3, %v2
    %s5 = scalar_lea.vmem %s0, 8
    %v6 = vld [vmem:[%s5] sm:$0x1]
    %7 = vrot.lane.b32.xlu0 %v6, 24
    %v8 = vpop.permute.xlu0 %7
    %vm9 = vcmask 220352
    %10 = vst.msk [vmem:[#allocation0] sm:$0x1] %vm9, %v8
    %s11 = scalar_lea.vmem %s0, 7
    %v12 = vld [vmem:[%s11] sm:$0x1]
    %13 = vrot.lane.b32.xlu0 %v12, 21
    %v14 = vpop.permute.xlu0 %13
    %vm15 = vcmask 195752
    %16 = vst.msk [vmem:[#allocation0] sm:$0x1] %vm15, %v14
    %s17 = scalar_lea.vmem %s0, 6
    %v18 = vld [vmem:[%s17] sm:$0x1]
    %19 = vrot.lane.b32.xlu0 %v18, 18
    %v20 = vpop.permute.xlu0 %19
    %vm21 = vcmask 171152
    %22 = vst.msk [vmem:[#allocation0] sm:$0x1] %vm21, %v20
    %s23 = scalar_lea.vmem %s0, 5
    %v24 = vld [vmem:[%s23] sm:$0x1]
    %25 = vrot.lane.b32.xlu0 %v24, 15
    %v26 = vpop.permute.xlu0 %25
    %vm27 = vcmask 146552
    %28 = vst.msk [vmem:[#allocation0] sm:$0x1] %vm27, %v26
    %s29 = scalar_lea.vmem %s0, 4
    %v30 = vld [vmem:[%s29] sm:$0x1]
    %31 = vrot.lane.b32.xlu0 %v30, 12
    %v32 = vpop.permute.xlu0 %31
    %vm33 = vcmask 121952
    %34 = vst.msk [vmem:[#allocation0] sm:$0x1] %vm33, %v32
    %s35 = scalar_lea.vmem %s0, 3
    %v36 = vld [vmem:[%s35] sm:$0x1]
    %37 = vrot.lane.b32.xlu0 %v36, 9
    %v38 = vpop.permute.xlu0 %37
    %vm39 = vcmask 97352
    %40 = vst.msk [vmem:[#allocation0] sm:$0x1] %vm39, %v38
    %s41 = scalar_lea.vmem %s0, 2
    %v42 = vld [vmem:[%s41] sm:$0x1]
    %43 = vrot.lane.b32.xlu0 %v42, 6
    %v44 = vpop.permute.xlu0 %43
    %vm45 = vcmask 72752
    %46 = vst.msk [vmem:[#allocation0] sm:$0x1] %vm45, %v44
    %s47 = scalar_lea.vmem %s0, 1
    %v48 = vld [vmem:[%s47] sm:$0x1]
    %49 = vrot.lane.b32.xlu0 %v48, 3
    %v50 = vpop.permute.xlu0 %49
    %vm51 = vcmask 48152
    %52 = vst.msk [vmem:[#allocation0] sm:$0x1] %vm51, %v50
    %s54 = sshllo.u32 0, 1
    %v56 = vld [vmem:[#allocation0] sm:%s54]
    %s57 = sshllo.u32 0, 1
    %58 = vst [vmem:[%s1] sm:%s57] %v56

// kernel: _cnn_forward_impl.1
$region0: #{_cnn_forward_impl.1}
  #allocation0 [shape = 'u32[]', space=smem, size = 0x4, offset = 0x4, fixed_abs, tag = 'smem constant byte address 0x4 - core index']
  #allocation1 [shape = 'u32[144,128]{1,0:T(1,128)}', space=vmem, size = 0x12000, scoped, tag = 'internal scratch']
  %s0 = inlined_call_operand.vmem [shape: bf16[2,64,36], index: 0, kind: input, shape index: {}]
  %s1 = inlined_call_operand.vmem [shape: f32[64,27], index: 1, kind: input, shape index: {}]
  %s2 = inlined_call_operand.vmem [shape: bf16[36,27], index: 2, kind: input, shape index: {}]
  %s3 = inlined_call_operand.vmem [shape: bf16[27,32], index: 3, kind: input, shape index: {}]
  %s4 = inlined_call_operand.vmem [shape: f32[1,32], index: 4, kind: input, shape index: {}]
  %s5 = inlined_call_operand.vmem [shape: bf16[32,1280], index: 5, kind: input, shape index: {}]
  %s6 = inlined_call_operand.vmem [shape: f32[1,1280], index: 6, kind: input, shape index: {}]
  %s7 = inlined_call_operand.vmem [shape: bf16[1280,128], index: 7, kind: input, shape index: {}]
  %s8 = inlined_call_operand.vmem [shape: f32[1,128], index: 8, kind: input, shape index: {}]
  %s9 = inlined_call_operand.hbm [shape: f32[2,1,128], index: 9, kind: output, shape index: {}]
  %s10 = sld [smem:[#allocation0]]
  $region69: #{_cnn_forward_impl.1} parent=0
    _
  %s12 = ssub.s32 1, %s10
  %s13 = scalar_select 0, %s12, %s10
  $region1: #{_cnn_forward_impl.1} parent=0
    #allocation2 [shape = 'u8[1024]{0}', space=vmem, size = 0x400, scoped, tag = 'output window, operand 0']
    #allocation3 [shape = 's32[2]{0}', space=sflag, size = 0x8, scoped, tag = 'scoped memory for _cnn_forward_impl.1']
    %14 = vsyncpa [#allocation3], 0
    %s15 = scalar_lea.sflag [#allocation3], 1
    %16 = vsyncpa %s15, 0
    loop: start=0, step=1, limit=4
    $region2: #{_cnn_forward_impl.1} parent=1 // loop_pre_header
      _
    $region3: #{_cnn_forward_impl.1} parent=1 // loop_header
      %s18 = sphi 0, %s22
      %p19 = scmp.ge.s32.totalorder %s18, 4
      %s28 = sphi 0, %s30
      %s31 = sphi 0, %s28
      %s32 = sphi 0, %s31
      %s48 = sphi 0, %s32
      %s52 = sphi 0, %s52
      %s54 = sphi 0, %s52
      %s55 = sphi 0, %s54
      %s69 = sphi 0, %s55
      %s73 = sphi 0, %s73
      %s75 = sphi 0, %s73
      %s76 = sphi 0, %s75
      %s90 = sphi 0, %s76
      %s94 = sphi 0, %s94
      %s96 = sphi 0, %s94
      %s97 = sphi 0, %s96
      %s111 = sphi 0, %s97
      %s115 = sphi 0, %s115
      %s117 = sphi 0, %s115
      %s118 = sphi 0, %s117
      %s132 = sphi 0, %s118
      %s136 = sphi 0, %s136
      %s138 = sphi 0, %s136
      %s139 = sphi 0, %s138
      %s153 = sphi 0, %s139
      %s157 = sphi 0, %s157
      %s159 = sphi 0, %s157
      %s160 = sphi 0, %s159
      %s174 = sphi 0, %s160
      %s178 = sphi 0, %s178
      %s180 = sphi 0, %s178
      %s181 = sphi 0, %s180
      %s195 = sphi 0, %s181
      %s199 = sphi 0, %s199
      %s201 = sphi 0, %s199
      %s202 = sphi 0, %s201
      %s216 = sphi 0, %s202
      %s222 = sphi 0, %s224
      %s225 = sphi 0, %s222
      %s226 = sphi 0, %s225
      %s242 = sphi 0, %s226
    $region4: #{_cnn_forward_impl.1} parent=1 // loop_header_branch
      %21 = sbr.rel (%p19) target = $region8
    $region5: #{_cnn_forward_impl.1} parent=1 // loop_body
      %s23 = ssub.s32 %s18, 1
      %s24 = ssub.s32 %s18, 2
      %s25 = sadd.s32 %s18, 1
      %s26 = ssub.s32 %s18, %s25
      %p27 = scmp.eq.s32.totalorder %s26, 0
      %s29 = sadd.s32 %s28, 1
      %s30 = scalar_select %p27, %s28, %s29
      %p33 = pneg %p27
      %p34 = scmp.eq.s32.totalorder %s18, 1
      %p35 = por %p33, %p34
      %p36 = scmp.ne.s32.totalorder %s28, %s31
      %p37 = scmp.eq.s32.totalorder %s18, 0
      %p38 = por %p36, %p37
      %p39 = scmp.ne.s32.totalorder %s28, %s31
      %p40 = scmp.eq.s32.totalorder %s23, 1
      %p41 = por %p39, %p40
      %p42 = scmp.ne.s32.totalorder %s31, %s32
      %p43 = scmp.eq.s32.totalorder %s23, 0
      %p44 = por %p42, %p43
      %p45 = scmp.ne.s32.totalorder %s31, %s32
      %p46 = scmp.eq.s32.totalorder %s24, 1
      %p47 = por %p45, %p46
      %p49 = scmp.ne.s32.totalorder %s32, %s48
      %p50 = scmp.eq.s32.totalorder %s24, 0
      %p51 = por %p49, %p50
      %s53 = sadd.s32 %s52, 1
      %p56 = scmp.eq.s32.totalorder %s18, 1
      %p57 = scmp.ne.s32.totalorder %s52, %s54
      %p58 = scmp.eq.s32.totalorder %s18, 0
      %p59 = por %p57, %p58
      %p60 = scmp.ne.s32.totalorder %s52, %s54
      %p61 = scmp.eq.s32.totalorder %s23, 1
      %p62 = por %p60, %p61
      %p63 = scmp.ne.s32.totalorder %s54, %s55
      %p64 = scmp.eq.s32.totalorder %s23, 0
      %p65 = por %p63, %p64
      %p66 = scmp.ne.s32.totalorder %s54, %s55
      %p67 = scmp.eq.s32.totalorder %s24, 1
      %p68 = por %p66, %p67
      %p70 = scmp.ne.s32.totalorder %s55, %s69
      %p71 = scmp.eq.s32.totalorder %s24, 0
      %p72 = por %p70, %p71
      %s74 = sadd.s32 %s73, 1
      %p77 = scmp.eq.s32.totalorder %s18, 1
      %p78 = scmp.ne.s32.totalorder %s73, %s75
      %p79 = scmp.eq.s32.totalorder %s18, 0
      %p80 = por %p78, %p79
      %p81 = scmp.ne.s32.totalorder %s73, %s75
      %p82 = scmp.eq.s32.totalorder %s23, 1
      %p83 = por %p81, %p82
      %p84 = scmp.ne.s32.totalorder %s75, %s76
      %p85 = scmp.eq.s32.totalorder %s23, 0
      %p86 = por %p84, %p85
      %p87 = scmp.ne.s32.totalorder %s75, %s76
      %p88 = scmp.eq.s32.totalorder %s24, 1
      %p89 = por %p87, %p88
      %p91 = scmp.ne.s32.totalorder %s76, %s90
      %p92 = scmp.eq.s32.totalorder %s24, 0
      %p93 = por %p91, %p92
      %s95 = sadd.s32 %s94, 1
      %p98 = scmp.eq.s32.totalorder %s18, 1
      %p99 = scmp.ne.s32.totalorder %s94, %s96
      %p100 = scmp.eq.s32.totalorder %s18, 0
      %p101 = por %p99, %p100
      %p102 = scmp.ne.s32.totalorder %s94, %s96
      %p103 = scmp.eq.s32.totalorder %s23, 1
      %p104 = por %p102, %p103
      %p105 = scmp.ne.s32.totalorder %s96, %s97
      %p106 = scmp.eq.s32.totalorder %s23, 0
      %p107 = por %p105, %p106
      %p108 = scmp.ne.s32.totalorder %s96, %s97
      %p109 = scmp.eq.s32.totalorder %s24, 1
      %p110 = por %p108, %p109
      %p112 = scmp.ne.s32.totalorder %s97, %s111
      %p113 = scmp.eq.s32.totalorder %s24, 0
      %p114 = por %p112, %p113
      %s116 = sadd.s32 %s115, 1
      %p119 = scmp.eq.s32.totalorder %s18, 1
      %p120 = scmp.ne.s32.totalorder %s115, %s117
      %p121 = scmp.eq.s32.totalorder %s18, 0
      %p122 = por %p120, %p121
      %p123 = scmp.ne.s32.totalorder %s115, %s117
      %p124 = scmp.eq.s32.totalorder %s23, 1
      %p125 = por %p123, %p124
      %p126 = scmp.ne.s32.totalorder %s117, %s118
      %p127 = scmp.eq.s32.totalorder %s23, 0
      %p128 = por %p126, %p127
      %p129 = scmp.ne.s32.totalorder %s117, %s118
      %p130 = scmp.eq.s32.totalorder %s24, 1
      %p131 = por %p129, %p130
      %p133 = scmp.ne.s32.totalorder %s118, %s132
      %p134 = scmp.eq.s32.totalorder %s24, 0
      %p135 = por %p133, %p134
      %s137 = sadd.s32 %s136, 1
      %p140 = scmp.eq.s32.totalorder %s18, 1
      %p141 = scmp.ne.s32.totalorder %s136, %s138
      %p142 = scmp.eq.s32.totalorder %s18, 0
      %p143 = por %p141, %p142
      %p144 = scmp.ne.s32.totalorder %s136, %s138
      %p145 = scmp.eq.s32.totalorder %s23, 1
      %p146 = por %p144, %p145
      %p147 = scmp.ne.s32.totalorder %s138, %s139
      %p148 = scmp.eq.s32.totalorder %s23, 0
      %p149 = por %p147, %p148
      %p150 = scmp.ne.s32.totalorder %s138, %s139
      %p151 = scmp.eq.s32.totalorder %s24, 1
      %p152 = por %p150, %p151
      %p154 = scmp.ne.s32.totalorder %s139, %s153
      %p155 = scmp.eq.s32.totalorder %s24, 0
      %p156 = por %p154, %p155
      %s158 = sadd.s32 %s157, 1
      %p161 = scmp.eq.s32.totalorder %s18, 1
      %p162 = scmp.ne.s32.totalorder %s157, %s159
      %p163 = scmp.eq.s32.totalorder %s18, 0
      %p164 = por %p162, %p163
      %p165 = scmp.ne.s32.totalorder %s157, %s159
      %p166 = scmp.eq.s32.totalorder %s23, 1
      %p167 = por %p165, %p166
      %p168 = scmp.ne.s32.totalorder %s159, %s160
      %p169 = scmp.eq.s32.totalorder %s23, 0
      %p170 = por %p168, %p169
      %p171 = scmp.ne.s32.totalorder %s159, %s160
      %p172 = scmp.eq.s32.totalorder %s24, 1
      %p173 = por %p171, %p172
      %p175 = scmp.ne.s32.totalorder %s160, %s174
      %p176 = scmp.eq.s32.totalorder %s24, 0
      %p177 = por %p175, %p176
      %s179 = sadd.s32 %s178, 1
      %p182 = scmp.eq.s32.totalorder %s18, 1
      %p183 = scmp.ne.s32.totalorder %s178, %s180
      %p184 = scmp.eq.s32.totalorder %s18, 0
      %p185 = por %p183, %p184
      %p186 = scmp.ne.s32.totalorder %s178, %s180
      %p187 = scmp.eq.s32.totalorder %s23, 1
      %p188 = por %p186, %p187
      %p189 = scmp.ne.s32.totalorder %s180, %s181
      %p190 = scmp.eq.s32.totalorder %s23, 0
      %p191 = por %p189, %p190
      %p192 = scmp.ne.s32.totalorder %s180, %s181
      %p193 = scmp.eq.s32.totalorder %s24, 1
      %p194 = por %p192, %p193
      %p196 = scmp.ne.s32.totalorder %s181, %s195
      %p197 = scmp.eq.s32.totalorder %s24, 0
      %p198 = por %p196, %p197
      %s200 = sadd.s32 %s199, 1
      %p203 = scmp.eq.s32.totalorder %s18, 1
      %p204 = scmp.ne.s32.totalorder %s199, %s201
      %p205 = scmp.eq.s32.totalorder %s18, 0
      %p206 = por %p204, %p205
      %p207 = scmp.ne.s32.totalorder %s199, %s201
      %p208 = scmp.eq.s32.totalorder %s23, 1
      %p209 = por %p207, %p208
      %p210 = scmp.ne.s32.totalorder %s201, %s202
      %p211 = scmp.eq.s32.totalorder %s23, 0
      %p212 = por %p210, %p211
      %p213 = scmp.ne.s32.totalorder %s201, %s202
      %p214 = scmp.eq.s32.totalorder %s24, 1
      %p215 = por %p213, %p214
      %p217 = scmp.ne.s32.totalorder %s202, %s216
      %p218 = scmp.eq.s32.totalorder %s24, 0
      %p219 = por %p217, %p218
      %s220 = ssub.s32 %s18, %s25
      %p221 = scmp.eq.s32.totalorder %s220, 0
      %s223 = sadd.s32 %s222, 1
      %s224 = scalar_select %p221, %s222, %s223
      %p227 = pneg %p221
      %p228 = scmp.eq.s32.totalorder %s18, 1
      %p229 = por %p227, %p228
      %p230 = scmp.ne.s32.totalorder %s222, %s225
      %p231 = scmp.eq.s32.totalorder %s18, 0
      %p232 = por %p230, %p231
      %p233 = scmp.ne.s32.totalorder %s222, %s225
      %p234 = scmp.eq.s32.totalorder %s23, 1
      %p235 = por %p233, %p234
      %p236 = scmp.ne.s32.totalorder %s225, %s226
      %p237 = scmp.eq.s32.totalorder %s23, 0
      %p238 = por %p236, %p237
      %p239 = scmp.ne.s32.totalorder %s225, %s226
      %p240 = scmp.eq.s32.totalorder %s24, 1
      %p241 = por %p239, %p240
      %p243 = scmp.ne.s32.totalorder %s226, %s242
      %p244 = scmp.eq.s32.totalorder %s24, 0
      %p245 = por %p243, %p244
      %p246 = scmp.le.s32.totalorder 1, %s18
      %p247 = scmp.lt.s32.totalorder %s18, 3
      %p248 = pnand %p246, %p247
      %p249 = pneg %p248
      // Predicated region
      $region9: #{_cnn_forward_impl.1} parent=5 // pred_check
        _
      $region10: #{_cnn_forward_impl.1} parent=5 // pred_check_branch
        %251 = sbr.rel (%p248) target = $region12
      $region11: #{_cnn_forward_impl.1} parent=5 // pred_region
        %s252 = ssub.s32 %s18, 1
        // Predicated region
        $region13: #{_cnn_forward_impl.1} parent=11 // pred_check
          %p253 = pneg %p65
        $region14: #{_cnn_forward_impl.1} parent=11 // pred_check_branch
          %255 = sbr.rel (%p253) target = $region16
        $region15: #{_cnn_forward_impl.1} parent=11 // pred_region
          _
        $region16: #{_cnn_forward_impl.1} parent=11 // pred_fallthru
          _
        // Predicated region
        $region17: #{_cnn_forward_impl.1} parent=11 // pred_check
          %p256 = pneg %p86
        $region18: #{_cnn_forward_impl.1} parent=11 // pred_check_branch
          %258 = sbr.rel (%p256) target = $region20
        $region19: #{_cnn_forward_impl.1} parent=11 // pred_region
          _
        $region20: #{_cnn_forward_impl.1} parent=11 // pred_fallthru
          _
        // Predicated region
        $region21: #{_cnn_forward_impl.1} parent=11 // pred_check
          %p259 = pneg %p107
        $region22: #{_cnn_forward_impl.1} parent=11 // pred_check_branch
          %261 = sbr.rel (%p259) target = $region24
        $region23: #{_cnn_forward_impl.1} parent=11 // pred_region
          _
        $region24: #{_cnn_forward_impl.1} parent=11 // pred_fallthru
          _
        // Predicated region
        $region25: #{_cnn_forward_impl.1} parent=11 // pred_check
          %p262 = pneg %p128
        $region26: #{_cnn_forward_impl.1} parent=11 // pred_check_branch
          %264 = sbr.rel (%p262) target = $region28
        $region27: #{_cnn_forward_impl.1} parent=11 // pred_region
          _
        $region28: #{_cnn_forward_impl.1} parent=11 // pred_fallthru
          _
        // Predicated region
        $region29: #{_cnn_forward_impl.1} parent=11 // pred_check
          %p265 = pneg %p149
        $region30: #{_cnn_forward_impl.1} parent=11 // pred_check_branch
          %267 = sbr.rel (%p265) target = $region32
        $region31: #{_cnn_forward_impl.1} parent=11 // pred_region
          _
        $region32: #{_cnn_forward_impl.1} parent=11 // pred_fallthru
          _
        // Predicated region
        $region33: #{_cnn_forward_impl.1} parent=11 // pred_check
          %p268 = pneg %p170
        $region34: #{_cnn_forward_impl.1} parent=11 // pred_check_branch
          %270 = sbr.rel (%p268) target = $region36
        $region35: #{_cnn_forward_impl.1} parent=11 // pred_region
          _
        $region36: #{_cnn_forward_impl.1} parent=11 // pred_fallthru
          _
        // Predicated region
        $region37: #{_cnn_forward_impl.1} parent=11 // pred_check
          %p271 = pneg %p191
        $region38: #{_cnn_forward_impl.1} parent=11 // pred_check_branch
          %273 = sbr.rel (%p271) target = $region40
        $region39: #{_cnn_forward_impl.1} parent=11 // pred_region
          _
        $region40: #{_cnn_forward_impl.1} parent=11 // pred_fallthru
          _
        // Predicated region
        $region41: #{_cnn_forward_impl.1} parent=11 // pred_check
          %p274 = pneg %p212
        $region42: #{_cnn_forward_impl.1} parent=11 // pred_check_branch
          %276 = sbr.rel (%p274) target = $region44
        $region43: #{_cnn_forward_impl.1} parent=11 // pred_region
          _
        $region44: #{_cnn_forward_impl.1} parent=11 // pred_fallthru
          _
      $region12: #{_cnn_forward_impl.1} parent=5 // pred_fallthru
        _
      %p277 = scmp.lt.s32.totalorder %s18, 2
      // Predicated region
      $region45: #{_cnn_forward_impl.1} parent=5 // pred_check
        %p278 = pneg %p277
      $region46: #{_cnn_forward_impl.1} parent=5 // pred_check_branch
        %280 = sbr.rel (%p278) target = $region48
      $region47: #{_cnn_forward_impl.1} parent=5 // pred_region
        // Predicated region
        $region49: #{_cnn_forward_impl.1} parent=47 // pred_check
          %p281 = pneg %p38
        $region50: #{_cnn_forward_impl.1} parent=47 // pred_check_branch
          %283 = sbr.rel (%p281) target = $region52
        $region51: #{_cnn_forward_impl.1} parent=47 // pred_region
          %p284 = scmp.lt.s32.totalorder %s18, 1
          %s285 = scalar_select %p284, %s18, 1
          %s286 = smul.addr %s285, 8
          %s287 = smul.addr %s286, 4
          %s288 = scalar_lea.vmem %s0, %s287
        $region52: #{_cnn_forward_impl.1} parent=47 // pred_fallthru
          _
      $region48: #{_cnn_forward_impl.1} parent=5 // pred_fallthru
        _
      %p289 = scmp.le.s32.totalorder 1, %s18
      %p290 = scmp.lt.s32.totalorder %s18, 3
      %p291 = pnand %p289, %p290
      %p292 = pneg %p291
      // Predicated region
      $region53: #{_cnn_forward_impl.1} parent=5 // pred_check
        _
      $region54: #{_cnn_forward_impl.1} parent=5 // pred_check_branch
        %294 = sbr.rel (%p291) target = $region56
      $region55: #{_cnn_forward_impl.1} parent=5 // pred_region
        %s295 = ssub.s32 %s18, 1
        %p296 = scmp.lt.s32.totalorder %s23, 1
        %s297 = scalar_select %p296, %s23, 1
        %s298 = smul.addr %s297, 8
        %s299 = smul.addr %s298, 4
        %s300 = scalar_lea.vmem %s0, %s299
        %p301 = pneg %p44
        %p302 = pneg %p41
        %p303 = pneg %p65
        %p304 = pneg %p62
        %p305 = pneg %p86
        %p306 = pneg %p83
        %p307 = pneg %p107
        %p308 = pneg %p104
        %p309 = pneg %p128
        %p310 = pneg %p125
        %p311 = pneg %p149
        %p312 = pneg %p146
        %p313 = pneg %p170
        %p314 = pneg %p167
        %p315 = pneg %p191
        %p316 = pneg %p188
        %p317 = pneg %p212
        %p318 = pneg %p209
        %p319 = pneg %p238
        %p320 = pneg %p235
        %s321 = sand.u32 %s225, 1
        %s322 = scalar_lea.sflag [#allocation3], %s321
        %s323 = sand.u32 %s225, 1
        %s324 = scalar_lea.vmem [#allocation2], %s323
        %p325 = scmp.lt.s32.totalorder %s23, 1
        %s326 = scalar_select %p325, %s23, 1
        %s327 = smul.addr %s326, 8
        %s328 = smul.addr %s327, 4
        %s329 = scalar_lea.vmem %s0, %s328
        %v331 = vld [vmem:[%s329] sm:$0xf]
        %v332 = vld [vmem:[%s329 + $0x4] sm:$0xf]
        %v333 = vld [vmem:[%s329 + $0x8] sm:$0xf]
        %v334 = vld [vmem:[%s329 + $0xc] sm:$0xf]
        %v335 = vld [vmem:[%s329 + $0x10] sm:$0xf]
        %v336 = vld [vmem:[%s329 + $0x14] sm:$0xf]
        %v337 = vld [vmem:[%s329 + $0x18] sm:$0xf]
        %v338 = vld [vmem:[%s329 + $0x1c] sm:$0xf]
        %v339 = vld [vmem:[%s2] sm:$0xf]
        %v340 = vld [vmem:[%s2 + $0x4] sm:$0xf]
        %v341 = vld [vmem:[%s2 + $0x8] sm:$0xf]
        %v342 = vld [vmem:[%s2 + $0xc] sm:$0xf]
        %v343 = vld [vmem:[%s2 + $0x10] sm:$0x3]
        %v344 = vld [vmem:[%s1] sm:$0xff]
        %v345 = vld [vmem:[%s1 + $0x8] sm:$0xff]
        %v346 = vld [vmem:[%s1 + $0x10] sm:$0xff]
        %v347 = vld [vmem:[%s1 + $0x18] sm:$0xff]
        %v348 = vld [vmem:[%s1 + $0x20] sm:$0xff]
        %v349 = vld [vmem:[%s1 + $0x28] sm:$0xff]
        %v350 = vld [vmem:[%s1 + $0x30] sm:$0xff]
        %v351 = vld [vmem:[%s1 + $0x38] sm:$0xff]
        %v360 = vunpack.c.l.b16 %v331
        %v361 = vunpack.c.l.b16 %v332
        %v362 = vunpack.c.l.b16 %v333
        %v363 = vunpack.c.l.b16 %v334
        %v364 = vunpack.c.l.b16 %v335
        %v365 = vunpack.c.l.b16 %v336
        %v366 = vunpack.c.l.b16 %v337
        %v367 = vunpack.c.l.b16 %v338
        %v368 = vpack.c.b16 %v361, %v360
        %v369 = vpack.c.b16 %v363, %v362
        %v370 = vpack.c.b16 %v365, %v364
        %v371 = vpack.c.b16 %v367, %v366
        %v377 = vunpack.c.l.b16 %v339
        %v378 = vunpack.c.l.b16 %v340
        %v379 = vunpack.c.l.b16 %v341
        %v380 = vunpack.c.l.b16 %v342
        %v381 = vunpack.c.l.b16 %v343
        %v382 = vpack.c.b16 %v378, %v377
        %v383 = vpack.c.b16 %v380, %v379
        %v384 = vpack.c.b16 %v381, %v381
        %vm387 = vcmask 293888
        %v389 = vsel %vm387, %v368, 0
        %v392 = vsel %vm387, %v369, 0
        %v395 = vsel %vm387, %v370, 0
        %v398 = vsel %vm387, %v371, 0
        %vm400 = vcmask 1041408
        %v402 = vsel %vm400, %v384, 0
        %404 = vmatprep.subr.bf16.mxu0 0
        %405 = vmatpush1.bf16.msra.mxu0 %v382
        %406 = vmatprep.subr.bf16.mxu0 0
        %407 = vmatpush1.bf16.msra.mxu0 %v383
        %408 = vmatprep.subr.bf16.mxu0 0
        %409 = vmatpush1.bf16.msra.mxu0 %v402
        %410 = vmatprep.subr.bf16.mxu0 0
        %411 = vmatpush1.bf16.msra.mxu0 0
        %412 = vmatprep.subr.bf16.mxu0 0
        %413 = vmatpush1.bf16.msra.mxu0 0
        %414 = vmatprep.subr.bf16.mxu0 0
        %415 = vmatpush1.bf16.msra.mxu0 0
        %416 = vmatprep.subr.bf16.mxu0 0
        %417 = vmatpush1.bf16.msra.mxu0 0
        %418 = vmatprep.subr.bf16.mxu0 0
        %419 = vmatpush1.bf16.msra.mxu0 0
        %420 = vmatprep.subr.bf16.mxu0 0
        %421 = vmatpush1.bf16.msra.mxu0 0
        %422 = vmatprep.subr.bf16.mxu0 0
        %423 = vmatpush1.bf16.msra.mxu0 0
        %424 = vmatprep.subr.bf16.mxu0 0
        %425 = vmatpush1.bf16.msra.mxu0 0
        %426 = vmatprep.subr.bf16.mxu0 0
        %427 = vmatpush1.bf16.msra.mxu0 0
        %428 = vmatprep.subr.bf16.mxu0 0
        %429 = vmatpush1.bf16.msra.mxu0 0
        %430 = vmatprep.subr.bf16.mxu0 0
        %431 = vmatpush1.bf16.msra.mxu0 0
        %432 = vmatprep.subr.bf16.mxu0 0
        %433 = vmatpush1.bf16.msra.mxu0 0
        %434 = vmatprep.subr.bf16.mxu0 0
        %435 = vmatpush1.bf16.msra.mxu0 0
        %436 = vmatprep.mubr.bf16.mxu0 0
        %437 = vmatmul.mubr.bf16.gmra.mrb[0].mxu0 %v389
        %v438 = vpop.f32.mrb[0].mxu0
        %v439 = vadd.f32 %v344, %v438
        %v440 = vpop.f32.mrb[0].mxu0
        %v441 = vpop.f32.mrb[0].mxu0
        %v442 = vadd.f32 %v345, %v441
        %v443 = vpop.f32.mrb[0].mxu0
        %444 = vmatprep.mubr.bf16.mxu0 0
        %445 = vmatmul.mubr.bf16.gmra.mrb[0].mxu0 %v392
        %v446 = vpop.f32.mrb[0].mxu0
        %v447 = vadd.f32 %v346, %v446
        %v448 = vpop.f32.mrb[0].mxu0
        %v449 = vpop.f32.mrb[0].mxu0
        %v450 = vadd.f32 %v347, %v449
        %v451 = vpop.f32.mrb[0].mxu0
        %452 = vmatprep.mubr.bf16.mxu0 0
        %453 = vmatmul.mubr.bf16.gmra.mrb[0].mxu0 %v395
        %v454 = vpop.f32.mrb[0].mxu0
        %v455 = vadd.f32 %v348, %v454
        %v456 = vpop.f32.mrb[0].mxu0
        %v457 = vpop.f32.mrb[0].mxu0
        %v458 = vadd.f32 %v349, %v457
        %v459 = vpop.f32.mrb[0].mxu0
        %460 = vmatprep.mubr.bf16.mxu0 0
        %461 = vmatmul.mubr.bf16.gmra.mrb[0].mxu0 %v398
        %v462 = vpop.f32.mrb[0].mxu0
        %v463 = vadd.f32 %v350, %v462
        %v464 = vpop.f32.mrb[0].mxu0
        %v465 = vpop.f32.mrb[0].mxu0
        %v466 = vadd.f32 %v351, %v465
        %v467 = vpop.f32.mrb[0].mxu0
        %468 = vdwg.mxu0
        %v469 = vmax.f32 %v439, 0.0
        %v470 = vmax.f32 %v442, 0.0
        %v471 = vmax.f32 %v447, 0.0
        %v472 = vmax.f32 %v450, 0.0
        %v473 = vmax.f32 %v455, 0.0
        %v474 = vmax.f32 %v458, 0.0
        %v475 = vmax.f32 %v463, 0.0
        %v476 = vmax.f32 %v466, 0.0
        %v477 = vpack.c.bf16 %v470, %v469
        %v478 = vpack.c.bf16 %v472, %v471
        %v479 = vpack.c.bf16 %v474, %v473
        %v480 = vpack.c.bf16 %v476, %v475
        %v481 = vld [vmem:[%s3] sm:$0xf]
        %v482 = vld [vmem:[%s3 + $0x4] sm:$0xf]
        %v483 = vld [vmem:[%s3 + $0x8] sm:$0xf]
        %v484 = vld [vmem:[%s3 + $0xc] sm:$0x3]
        %v485 = vld [vmem:[%s4] sm:$0x1]
        %v487 = vlaneseq
        %v488 = vshrl.u32 %v487, 7
        %v489 = vsub.s32 0, %v488
        %v490 = vrot.slane %v485, %v489
        %v496 = vunpack.c.l.b16 %v481
        %v497 = vunpack.c.l.b16 %v482
        %v498 = vunpack.c.l.b16 %v483
        %v499 = vunpack.c.l.b16 %v484
        %v500 = vpack.c.b16 %v497, %v496
        %v501 = vpack.c.b16 %v499, %v498
        %vm503 = vcmask 220160
        %v505 = vsel %vm503, %v477, 0
        %v508 = vsel %vm503, %v478, 0
        %v511 = vsel %vm503, %v479, 0
        %v514 = vsel %vm503, %v480, 0
        %vm516 = vcmask 1044480
        %vm517 = vcmask 1045504
        %v518 = vsel %vm516, 4294967295, 65535
        %v519 = vsel %vm517, %v518, 0
        %v521 = vand.u32 %v501, %v519
        %523 = vmatprep.subr.bf16.mxu0 0
        %524 = vmatpush1.bf16.msra.mxu0 %v500
        %525 = vmatprep.subr.bf16.mxu0 0
        %526 = vmatpush1.bf16.msra.mxu0 %v521
        %527 = vmatprep.subr.bf16.mxu0 0
        %528 = vmatpush1.bf16.msra.mxu0 0
        %529 = vmatprep.subr.bf16.mxu0 0
        %530 = vmatpush1.bf16.msra.mxu0 0
        %531 = vmatprep.subr.bf16.mxu0 0
        %532 = vmatpush1.bf16.msra.mxu0 0
        %533 = vmatprep.subr.bf16.mxu0 0
        %534 = vmatpush1.bf16.msra.mxu0 0
        %535 = vmatprep.subr.bf16.mxu0 0
        %536 = vmatpush1.bf16.msra.mxu0 0
        %537 = vmatprep.subr.bf16.mxu0 0
        %538 = vmatpush1.bf16.msra.mxu0 0
        %539 = vmatprep.subr.bf16.mxu0 0
        %540 = vmatpush1.bf16.msra.mxu0 0
        %541 = vmatprep.subr.bf16.mxu0 0
        %542 = vmatpush1.bf16.msra.mxu0 0
        %543 = vmatprep.subr.bf16.mxu0 0
        %544 = vmatpush1.bf16.msra.mxu0 0
        %545 = vmatprep.subr.bf16.mxu0 0
        %546 = vmatpush1.bf16.msra.mxu0 0
        %547 = vmatprep.subr.bf16.mxu0 0
        %548 = vmatpush1.bf16.msra.mxu0 0
        %549 = vmatprep.subr.bf16.mxu0 0
        %550 = vmatpush1.bf16.msra.mxu0 0
        %551 = vmatprep.subr.bf16.mxu0 0
        %552 = vmatpush1.bf16.msra.mxu0 0
        %553 = vmatprep.subr.bf16.mxu0 0
        %554 = vmatpush1.bf16.msra.mxu0 0
        %555 = vmatprep.mubr.bf16.mxu0 0
        %556 = vmatmul.mubr.bf16.gmra.mrb[0].mxu0 %v505
        %v557 = vpop.f32.mrb[0].mxu0
        %v558 = vadd.f32 %v490, %v557
        %v559 = vpop.f32.mrb[0].mxu0
        %v560 = vpop.f32.mrb[0].mxu0
        %v561 = vadd.f32 %v490, %v560
        %v562 = vpop.f32.mrb[0].mxu0
        %563 = vmatprep.mubr.bf16.mxu0 0
        %564 = vmatmul.mubr.bf16.gmra.mrb[0].mxu0 %v508
        %v565 = vpop.f32.mrb[0].mxu0
        %v566 = vadd.f32 %v490, %v565
        %v567 = vpop.f32.mrb[0].mxu0
        %v568 = vpop.f32.mrb[0].mxu0
        %v569 = vadd.f32 %v490, %v568
        %v570 = vpop.f32.mrb[0].mxu0
        %571 = vmatprep.mubr.bf16.mxu0 0
        %572 = vmatmul.mubr.bf16.gmra.mrb[0].mxu0 %v511
        %v573 = vpop.f32.mrb[0].mxu0
        %v574 = vadd.f32 %v490, %v573
        %v575 = vpop.f32.mrb[0].mxu0
        %v576 = vpop.f32.mrb[0].mxu0
        %v577 = vadd.f32 %v490, %v576
        %v578 = vpop.f32.mrb[0].mxu0
        %579 = vmatprep.mubr.bf16.mxu0 0
        %580 = vmatmul.mubr.bf16.gmra.mrb[0].mxu0 %v514
        %v581 = vpop.f32.mrb[0].mxu0
        %v582 = vadd.f32 %v490, %v581
        %v583 = vpop.f32.mrb[0].mxu0
        %v584 = vpop.f32.mrb[0].mxu0
        %v585 = vadd.f32 %v490, %v584
        %v586 = vpop.f32.mrb[0].mxu0
        %587 = vdwg.mxu0
        %v588 = vxor.u32 %v558, 2147483648
        %v589 = vxor.u32 %v561, 2147483648
        %v590 = vxor.u32 %v566, 2147483648
        %v591 = vxor.u32 %v569, 2147483648
        %v592 = vxor.u32 %v574, 2147483648
        %v593 = vxor.u32 %v577, 2147483648
        %v594 = vxor.u32 %v582, 2147483648
        %v595 = vxor.u32 %v585, 2147483648
        %v596 = vmul.f32 %v588, 1.442695
        %v597 = vpow.pop %v596
        %v598 = vmul.f32 %v589, 1.442695
        %v599 = vpow.pop %v598
        %v600 = vmul.f32 %v590, 1.442695
        %v601 = vpow.pop %v600
        %v602 = vmul.f32 %v591, 1.442695
        %v603 = vpow.pop %v602
        %v604 = vmul.f32 %v592, 1.442695
        %v605 = vpow.pop %v604
        %v606 = vmul.f32 %v593, 1.442695
        %v607 = vpow.pop %v606
        %v608 = vmul.f32 %v594, 1.442695
        %v609 = vpow.pop %v608
        %v610 = vmul.f32 %v595, 1.442695
        %v611 = vpow.pop %v610
        %v612 = vadd.f32 %v597, 1.0
        %v613 = vadd.f32 %v599, 1.0
        %v614 = vadd.f32 %v601, 1.0
        %v615 = vadd.f32 %v603, 1.0
        %v616 = vadd.f32 %v605, 1.0
        %v617 = vadd.f32 %v607, 1.0
        %v618 = vadd.f32 %v609, 1.0
        %v619 = vadd.f32 %v611, 1.0
        %v620 = vrcp.pop %v612
        %v621 = vmul.f32 1.0, %v620
        %v622 = vrcp.pop %v613
        %v623 = vmul.f32 1.0, %v622
        %v624 = vrcp.pop %v614
        %v625 = vmul.f32 1.0, %v624
        %v626 = vrcp.pop %v615
        %v627 = vmul.f32 1.0, %v626
        %v628 = vrcp.pop %v616
        %v629 = vmul.f32 1.0, %v628
        %v630 = vrcp.pop %v617
        %v631 = vmul.f32 1.0, %v630
        %v632 = vrcp.pop %v618
        %v633 = vmul.f32 1.0, %v632
        %v634 = vrcp.pop %v619
        %v635 = vmul.f32 1.0, %v634
        %v636 = vmul.f32 %v558, %v621
        %v637 = vmul.f32 %v561, %v623
        %v638 = vmul.f32 %v566, %v625
        %v639 = vmul.f32 %v569, %v627
        %v640 = vmul.f32 %v574, %v629
        %v641 = vmul.f32 %v577, %v631
        %v642 = vmul.f32 %v582, %v633
        %v643 = vmul.f32 %v585, %v635
        %v644 = vpack.c.bf16 %v637, %v636
        %v645 = vpack.c.bf16 %v639, %v638
        %v646 = vpack.c.bf16 %v641, %v640
        %v647 = vpack.c.bf16 %v643, %v642
        %v648 = vld [vmem:[%s5] sm:$0xff]
        %v649 = vld [vmem:[%s5 + $0x8] sm:$0xff]
        %v650 = vld [vmem:[%s5 + $0x10] sm:$0xf]
        %v651 = vld [vmem:[%s5 + $0x28] sm:$0xff]
        %v652 = vld [vmem:[%s5 + $0x30] sm:$0xff]
        %v653 = vld [vmem:[%s5 + $0x38] sm:$0xf]
        %v654 = vld [vmem:[%s5 + $0x50] sm:$0xff]
        %v655 = vld [vmem:[%s5 + $0x58] sm:$0xff]
        %v656 = vld [vmem:[%s5 + $0x60] sm:$0xf]
        %v657 = vld [vmem:[%s5 + $0x78] sm:$0xff]
        %v658 = vld [vmem:[%s5 + $0x80] sm:$0xff]
        %v659 = vld [vmem:[%s5 + $0x88] sm:$0xf]
        %v660 = vld [vmem:[%s6] sm:$0x1f]
        %v662 = vlaneseq
        %v663 = vshrl.u32 %v662, 7
        %v664 = vsub.s32 0, %v663
        %v665 = vrot.slane %v660, %v664
        %v666 = vlaneseq
        %v667 = vshrl.u32 %v666, 7
        %v668 = vsub.s32 1, %v667
        %v669 = vrot.slane %v660, %v668
        %v670 = vlaneseq
        %v671 = vshrl.u32 %v670, 7
        %v672 = vsub.s32 2, %v671
        %v673 = vrot.slane %v660, %v672
        %v674 = vlaneseq
        %v675 = vshrl.u32 %v674, 7
        %v676 = vsub.s32 3, %v675
        %v677 = vrot.slane %v660, %v676
        %v678 = vlaneseq
        %v679 = vshrl.u32 %v678, 7
        %v680 = vsub.s32 4, %v679
        %v681 = vrot.slane %v660, %v680
        %v699 = vunpack.c.l.b16 %v648
        %v700 = vunpack.c.h.b16 %v648
        %v701 = vunpack.c.l.b16 %v649
        %v702 = vunpack.c.h.b16 %v649
        %v703 = vunpack.c.l.b16 %v650
        %v704 = vunpack.c.l.b16 %v651
        %v705 = vunpack.c.h.b16 %v651
        %v706 = vunpack.c.l.b16 %v652
        %v707 = vunpack.c.h.b16 %v652
        %v708 = vunpack.c.l.b16 %v653
        %v709 = vunpack.c.l.b16 %v654
        %v710 = vunpack.c.h.b16 %v654
        %v711 = vunpack.c.l.b16 %v655
        %v712 = vunpack.c.h.b16 %v655
        %v713 = vunpack.c.l.b16 %v656
        %v714 = vunpack.c.l.b16 %v657
        %v715 = vunpack.c.h.b16 %v657
        %v716 = vunpack.c.l.b16 %v658
        %v717 = vunpack.c.h.b16 %v658
        %v718 = vunpack.c.l.b16 %v659
        %v719 = vpack.c.b16 %v704, %v699
        %v720 = vpack.c.b16 %v705, %v700
        %v721 = vpack.c.b16 %v706, %v701
        %v722 = vpack.c.b16 %v707, %v702
        %v723 = vpack.c.b16 %v708, %v703
        %v724 = vpack.c.b16 %v714, %v709
        %v725 = vpack.c.b16 %v715, %v710
        %v726 = vpack.c.b16 %v716, %v711
        %v727 = vpack.c.b16 %v717, %v712
        %v728 = vpack.c.b16 %v718, %v713
        %vm739 = vcmask 261120
        %v741 = vsel %vm739, %v644, 0
        %v744 = vsel %vm739, %v645, 0
        %v747 = vsel %vm739, %v646, 0
        %v750 = vsel %vm739, %v647, 0
        %752 = vmatprep.subr.bf16.mxu0 %v720
        %753 = vmatpush1.bf16.msra.mxu0 %v719
        %754 = vmatprep.subr.bf16.mxu0 %v725
        %755 = vmatpush1.bf16.msra.mxu0 %v724
        %756 = vmatprep.subr.bf16.mxu0 0
        %757 = vmatpush1.bf16.msra.mxu0 0
        %758 = vmatprep.subr.bf16.mxu0 0
        %759 = vmatpush1.bf16.msra.mxu0 0
        %760 = vmatprep.subr.bf16.mxu0 0
        %761 = vmatpush1.bf16.msra.mxu0 0
        %762 = vmatprep.subr.bf16.mxu0 0
        %763 = vmatpush1.bf16.msra.mxu0 0
        %764 = vmatprep.subr.bf16.mxu0 0
        %765 = vmatpush1.bf16.msra.mxu0 0
        %766 = vmatprep.subr.bf16.mxu0 0
        %767 = vmatpush1.bf16.msra.mxu0 0
        %768 = vmatprep.subr.bf16.mxu0 0
        %769 = vmatpush1.bf16.msra.mxu0 0
        %770 = vmatprep.subr.bf16.mxu0 0
        %771 = vmatpush1.bf16.msra.mxu0 0
        %772 = vmatprep.subr.bf16.mxu0 0
        %773 = vmatpush1.bf16.msra.mxu0 0
        %774 = vmatprep.subr.bf16.mxu0 0
        %775 = vmatpush1.bf16.msra.mxu0 0
        %776 = vmatprep.subr.bf16.mxu0 0
        %777 = vmatpush1.bf16.msra.mxu0 0
        %778 = vmatprep.subr.bf16.mxu0 0
        %779 = vmatpush1.bf16.msra.mxu0 0
        %780 = vmatprep.subr.bf16.mxu0 0
        %781 = vmatpush1.bf16.msra.mxu0 0
        %782 = vmatprep.subr.bf16.mxu0 0
        %783 = vmatpush1.bf16.msra.mxu0 0
        %784 = vmatprep.mubr.bf16.mxu0 0
        %785 = vmatmul.mubr.bf16.gmra.mrb[0].mxu0 %v741
        %v786 = vpop.f32.mrb[0].mxu0
        %v787 = vadd.f32 %v665, %v786
        %v788 = vpop.f32.mrb[0].mxu0
        %v789 = vadd.f32 %v669, %v788
        %v790 = vpop.f32.mrb[0].mxu0
        %v791 = vadd.f32 %v665, %v790
        %v792 = vpop.f32.mrb[0].mxu0
        %v793 = vadd.f32 %v669, %v792
        %794 = vmatprep.mubr.bf16.mxu0 0
        %795 = vmatmul.mubr.bf16.gmra.mrb[0].mxu0 %v744
        %v796 = vpop.f32.mrb[0].mxu0
        %v797 = vadd.f32 %v665, %v796
        %v798 = vpop.f32.mrb[0].mxu0
        %v799 = vadd.f32 %v669, %v798
        %v800 = vpop.f32.mrb[0].mxu0
        %v801 = vadd.f32 %v665, %v800
        %v802 = vpop.f32.mrb[0].mxu0
        %v803 = vadd.f32 %v669, %v802
        %804 = vmatprep.mubr.bf16.mxu0 0
        %805 = vmatmul.mubr.bf16.gmra.mrb[0].mxu0 %v747
        %v806 = vpop.f32.mrb[0].mxu0
        %v807 = vadd.f32 %v665, %v806
        %v808 = vpop.f32.mrb[0].mxu0
        %v809 = vadd.f32 %v669, %v808
        %v810 = vpop.f32.mrb[0].mxu0
        %v811 = vadd.f32 %v665, %v810
        %v812 = vpop.f32.mrb[0].mxu0
        %v813 = vadd.f32 %v669, %v812
        %814 = vmatprep.mubr.bf16.mxu0 0
        %815 = vmatmul.mubr.bf16.gmra.mrb[0].mxu0 %v750
        %v816 = vpop.f32.mrb[0].mxu0
        %v817 = vadd.f32 %v665, %v816
        %v818 = vpop.f32.mrb[0].mxu0
        %v819 = vadd.f32 %v669, %v818
        %v820 = vpop.f32.mrb[0].mxu0
        %v821 = vadd.f32 %v665, %v820
        %v822 = vpop.f32.mrb[0].mxu0
        %v823 = vadd.f32 %v669, %v822
        %824 = vdwg.mxu0
        %825 = vmatprep.subr.bf16.mxu0 %v722
        %826 = vmatpush1.bf16.msra.mxu0 %v721
        %827 = vmatprep.subr.bf16.mxu0 %v727
        %828 = vmatpush1.bf16.msra.mxu0 %v726
        %829 = vmatprep.subr.bf16.mxu0 0
        %830 = vmatpush1.bf16.msra.mxu0 0
        %831 = vmatprep.subr.bf16.mxu0 0
        %832 = vmatpush1.bf16.msra.mxu0 0
        %833 = vmatprep.subr.bf16.mxu0 0
        %834 = vmatpush1.bf16.msra.mxu0 0
        %835 = vmatprep.subr.bf16.mxu0 0
        %836 = vmatpush1.bf16.msra.mxu0 0
        %837 = vmatprep.subr.bf16.mxu0 0
        %838 = vmatpush1.bf16.msra.mxu0 0
        %839 = vmatprep.subr.bf16.mxu0 0
        %840 = vmatpush1.bf16.msra.mxu0 0
        %841 = vmatprep.subr.bf16.mxu0 0
        %842 = vmatpush1.bf16.msra.mxu0 0
        %843 = vmatprep.subr.bf16.mxu0 0
        %844 = vmatpush1.bf16.msra.mxu0 0
        %845 = vmatprep.subr.bf16.mxu0 0
        %846 = vmatpush1.bf16.msra.mxu0 0
        %847 = vmatprep.subr.bf16.mxu0 0
        %848 = vmatpush1.bf16.msra.mxu0 0
        %849 = vmatprep.subr.bf16.mxu0 0
        %850 = vmatpush1.bf16.msra.mxu0 0
        %851 = vmatprep.subr.bf16.mxu0 0
        %852 = vmatpush1.bf16.msra.mxu0 0
        %853 = vmatprep.subr.bf16.mxu0 0
        %854 = vmatpush1.bf16.msra.mxu0 0
        %855 = vmatprep.subr.bf16.mxu0 0
        %856 = vmatpush1.bf16.msra.mxu0 0
        %857 = vmatprep.mubr.bf16.mxu0 0
        %858 = vmatmul.mubr.bf16.gmra.mrb[0].mxu0 %v741
        %v859 = vpop.f32.mrb[0].mxu0
        %v860 = vadd.f32 %v673, %v859
        %v861 = vpop.f32.mrb[0].mxu0
        %v862 = vadd.f32 %v677, %v861
        %v863 = vpop.f32.mrb[0].mxu0
        %v864 = vadd.f32 %v673, %v863
        %v865 = vpop.f32.mrb[0].mxu0
        %v866 = vadd.f32 %v677, %v865
        %867 = vmatprep.mubr.bf16.mxu0 0
        %868 = vmatmul.mubr.bf16.gmra.mrb[0].mxu0 %v744
        %v869 = vpop.f32.mrb[0].mxu0
        %v870 = vadd.f32 %v673, %v869
        %v871 = vpop.f32.mrb[0].mxu0
        %v872 = vadd.f32 %v677, %v871
        %v873 = vpop.f32.mrb[0].mxu0
        %v874 = vadd.f32 %v673, %v873
        %v875 = vpop.f32.mrb[0].mxu0
        %v876 = vadd.f32 %v677, %v875
        %877 = vmatprep.mubr.bf16.mxu0 0
        %878 = vmatmul.mubr.bf16.gmra.mrb[0].mxu0 %v747
        %v879 = vpop.f32.mrb[0].mxu0
        %v880 = vadd.f32 %v673, %v879
        %v881 = vpop.f32.mrb[0].mxu0
        %v882 = vadd.f32 %v677, %v881
        %v883 = vpop.f32.mrb[0].mxu0
        %v884 = vadd.f32 %v673, %v883
        %v885 = vpop.f32.mrb[0].mxu0
        %v886 = vadd.f32 %v677, %v885
        %887 = vmatprep.mubr.bf16.mxu0 0
        %888 = vmatmul.mubr.bf16.gmra.mrb[0].mxu0 %v750
        %v889 = vpop.f32.mrb[0].mxu0
        %v890 = vadd.f32 %v673, %v889
        %v891 = vpop.f32.mrb[0].mxu0
        %v892 = vadd.f32 %v677, %v891
        %v893 = vpop.f32.mrb[0].mxu0
        %v894 = vadd.f32 %v673, %v893
        %v895 = vpop.f32.mrb[0].mxu0
        %v896 = vadd.f32 %v677, %v895
        %897 = vdwg.mxu0
        %898 = vmatprep.subr.bf16.mxu0 0
        %899 = vmatpush1.bf16.msra.mxu0 %v723
        %900 = vmatprep.subr.bf16.mxu0 0
        %901 = vmatpush1.bf16.msra.mxu0 %v728
        %902 = vmatprep.subr.bf16.mxu0 0
        %903 = vmatpush1.bf16.msra.mxu0 0
        %904 = vmatprep.subr.bf16.mxu0 0
        %905 = vmatpush1.bf16.msra.mxu0 0
        %906 = vmatprep.subr.bf16.mxu0 0
        %907 = vmatpush1.bf16.msra.mxu0 0
        %908 = vmatprep.subr.bf16.mxu0 0
        %909 = vmatpush1.bf16.msra.mxu0 0
        %910 = vmatprep.subr.bf16.mxu0 0
        %911 = vmatpush1.bf16.msra.mxu0 0
        %912 = vmatprep.subr.bf16.mxu0 0
        %913 = vmatpush1.bf16.msra.mxu0 0
        %914 = vmatprep.subr.bf16.mxu0 0
        %915 = vmatpush1.bf16.msra.mxu0 0
        %916 = vmatprep.subr.bf16.mxu0 0
        %917 = vmatpush1.bf16.msra.mxu0 0
        %918 = vmatprep.subr.bf16.mxu0 0
        %919 = vmatpush1.bf16.msra.mxu0 0
        %920 = vmatprep.subr.bf16.mxu0 0
        %921 = vmatpush1.bf16.msra.mxu0 0
        %922 = vmatprep.subr.bf16.mxu0 0
        %923 = vmatpush1.bf16.msra.mxu0 0
        %924 = vmatprep.subr.bf16.mxu0 0
        %925 = vmatpush1.bf16.msra.mxu0 0
        %926 = vmatprep.subr.bf16.mxu0 0
        %927 = vmatpush1.bf16.msra.mxu0 0
        %928 = vmatprep.subr.bf16.mxu0 0
        %929 = vmatpush1.bf16.msra.mxu0 0
        %930 = vmatprep.mubr.bf16.mxu0 0
        %931 = vmatmul.mubr.bf16.gmra.mrb[0].mxu0 %v741
        %v932 = vpop.f32.mrb[0].mxu0
        %v933 = vadd.f32 %v681, %v932
        %v934 = vpop.f32.mrb[0].mxu0
        %v935 = vpop.f32.mrb[0].mxu0
        %v936 = vadd.f32 %v681, %v935
        %v937 = vpop.f32.mrb[0].mxu0
        %938 = vmatprep.mubr.bf16.mxu0 0
        %939 = vmatmul.mubr.bf16.gmra.mrb[0].mxu0 %v744
        %v940 = vpop.f32.mrb[0].mxu0
        %v941 = vadd.f32 %v681, %v940
        %v942 = vpop.f32.mrb[0].mxu0
        %v943 = vpop.f32.mrb[0].mxu0
        %v944 = vadd.f32 %v681, %v943
        %v945 = vpop.f32.mrb[0].mxu0
        %946 = vmatprep.mubr.bf16.mxu0 0
        %947 = vmatmul.mubr.bf16.gmra.mrb[0].mxu0 %v747
        %v948 = vpop.f32.mrb[0].mxu0
        %v949 = vadd.f32 %v681, %v948
        %v950 = vpop.f32.mrb[0].mxu0
        %v951 = vpop.f32.mrb[0].mxu0
        %v952 = vadd.f32 %v681, %v951
        %v953 = vpop.f32.mrb[0].mxu0
        %954 = vmatprep.mubr.bf16.mxu0 0
        %955 = vmatmul.mubr.bf16.gmra.mrb[0].mxu0 %v750
        %v956 = vpop.f32.mrb[0].mxu0
        %v957 = vadd.f32 %v681, %v956
        %v958 = vpop.f32.mrb[0].mxu0
        %v959 = vpop.f32.mrb[0].mxu0
        %v960 = vadd.f32 %v681, %v959
        %v961 = vpop.f32.mrb[0].mxu0
        %962 = vdwg.mxu0
        %v963 = vxor.u32 %v787, 2147483648
        %v964 = vxor.u32 %v789, 2147483648
        %v965 = vxor.u32 %v860, 2147483648
        %v966 = vxor.u32 %v862, 2147483648
        %v967 = vxor.u32 %v933, 2147483648
        %v968 = vxor.u32 %v791, 2147483648
        %v969 = vxor.u32 %v793, 2147483648
        %v970 = vxor.u32 %v864, 2147483648
        %v971 = vxor.u32 %v866, 2147483648
        %v972 = vxor.u32 %v936, 2147483648
        %v973 = vxor.u32 %v797, 2147483648
        %v974 = vxor.u32 %v799, 2147483648
        %v975 = vxor.u32 %v870, 2147483648
        %v976 = vxor.u32 %v872, 2147483648
        %v977 = vxor.u32 %v941, 2147483648
        %v978 = vxor.u32 %v801, 2147483648
        %v979 = vxor.u32 %v803, 2147483648
        %v980 = vxor.u32 %v874, 2147483648
        %v981 = vxor.u32 %v876, 2147483648
        %v982 = vxor.u32 %v944, 2147483648
        %v983 = vxor.u32 %v807, 2147483648
        %v984 = vxor.u32 %v809, 2147483648
        %v985 = vxor.u32 %v880, 2147483648
        %v986 = vxor.u32 %v882, 2147483648
        %v987 = vxor.u32 %v949, 2147483648
        %v988 = vxor.u32 %v811, 2147483648
        %v989 = vxor.u32 %v813, 2147483648
        %v990 = vxor.u32 %v884, 2147483648
        %v991 = vxor.u32 %v886, 2147483648
        %v992 = vxor.u32 %v952, 2147483648
        %v993 = vxor.u32 %v817, 2147483648
        %v994 = vxor.u32 %v819, 2147483648
        %v995 = vxor.u32 %v890, 2147483648
        %v996 = vxor.u32 %v892, 2147483648
        %v997 = vxor.u32 %v957, 2147483648
        %v998 = vxor.u32 %v821, 2147483648
        %v999 = vxor.u32 %v823, 2147483648
        %v1000 = vxor.u32 %v894, 2147483648
        %v1001 = vxor.u32 %v896, 2147483648
        %v1002 = vxor.u32 %v960, 2147483648
        %v1003 = vmul.f32 %v963, 1.442695
        %v1004 = vpow.pop %v1003
        %v1005 = vmul.f32 %v964, 1.442695
        %v1006 = vpow.pop %v1005
        %v1007 = vmul.f32 %v965, 1.442695
        %v1008 = vpow.pop %v1007
        %v1009 = vmul.f32 %v966, 1.442695
        %v1010 = vpow.pop %v1009
        %v1011 = vmul.f32 %v967, 1.442695
        %v1012 = vpow.pop %v1011
        %v1013 = vmul.f32 %v968, 1.442695
        %v1014 = vpow.pop %v1013
        %v1015 = vmul.f32 %v969, 1.442695
        %v1016 = vpow.pop %v1015
        %v1017 = vmul.f32 %v970, 1.442695
        %v1018 = vpow.pop %v1017
        %v1019 = vmul.f32 %v971, 1.442695
        %v1020 = vpow.pop %v1019
        %v1021 = vmul.f32 %v972, 1.442695
        %v1022 = vpow.pop %v1021
        %v1023 = vmul.f32 %v973, 1.442695
        %v1024 = vpow.pop %v1023
        %v1025 = vmul.f32 %v974, 1.442695
        %v1026 = vpow.pop %v1025
        %v1027 = vmul.f32 %v975, 1.442695
        %v1028 = vpow.pop %v1027
        %v1029 = vmul.f32 %v976, 1.442695
        %v1030 = vpow.pop %v1029
        %v1031 = vmul.f32 %v977, 1.442695
        %v1032 = vpow.pop %v1031
        %v1033 = vmul.f32 %v978, 1.442695
        %v1034 = vpow.pop %v1033
        %v1035 = vmul.f32 %v979, 1.442695
        %v1036 = vpow.pop %v1035
        %v1037 = vmul.f32 %v980, 1.442695
        %v1038 = vpow.pop %v1037
        %v1039 = vmul.f32 %v981, 1.442695
        %v1040 = vpow.pop %v1039
        %v1041 = vmul.f32 %v982, 1.442695
        %v1042 = vpow.pop %v1041
        %v1043 = vmul.f32 %v983, 1.442695
        %v1044 = vpow.pop %v1043
        %v1045 = vmul.f32 %v984, 1.442695
        %v1046 = vpow.pop %v1045
        %v1047 = vmul.f32 %v985, 1.442695
        %v1048 = vpow.pop %v1047
        %v1049 = vmul.f32 %v986, 1.442695
        %v1050 = vpow.pop %v1049
        %v1051 = vmul.f32 %v987, 1.442695
        %v1052 = vpow.pop %v1051
        %v1053 = vmul.f32 %v988, 1.442695
        %v1054 = vpow.pop %v1053
        %v1055 = vmul.f32 %v989, 1.442695
        %v1056 = vpow.pop %v1055
        %v1057 = vmul.f32 %v990, 1.442695
        %v1058 = vpow.pop %v1057
        %v1059 = vmul.f32 %v991, 1.442695
        %v1060 = vpow.pop %v1059
        %v1061 = vmul.f32 %v992, 1.442695
        %v1062 = vpow.pop %v1061
        %v1063 = vmul.f32 %v993, 1.442695
        %v1064 = vpow.pop %v1063
        %v1065 = vmul.f32 %v994, 1.442695
        %v1066 = vpow.pop %v1065
        %v1067 = vmul.f32 %v995, 1.442695
        %v1068 = vpow.pop %v1067
        %v1069 = vmul.f32 %v996, 1.442695
        %v1070 = vpow.pop %v1069
        %v1071 = vmul.f32 %v997, 1.442695
        %v1072 = vpow.pop %v1071
        %v1073 = vmul.f32 %v998, 1.442695
        %v1074 = vpow.pop %v1073
        %v1075 = vmul.f32 %v999, 1.442695
        %v1076 = vpow.pop %v1075
        %v1077 = vmul.f32 %v1000, 1.442695
        %v1078 = vpow.pop %v1077
        %v1079 = vmul.f32 %v1001, 1.442695
        %v1080 = vpow.pop %v1079
        %v1081 = vmul.f32 %v1002, 1.442695
        %v1082 = vpow.pop %v1081
        %v1083 = vadd.f32 %v1004, 1.0
        %v1084 = vadd.f32 %v1006, 1.0
        %v1085 = vadd.f32 %v1008, 1.0
        %v1086 = vadd.f32 %v1010, 1.0
        %v1087 = vadd.f32 %v1012, 1.0
        %v1088 = vadd.f32 %v1014, 1.0
        %v1089 = vadd.f32 %v1016, 1.0
        %v1090 = vadd.f32 %v1018, 1.0
        %v1091 = vadd.f32 %v1020, 1.0
        %v1092 = vadd.f32 %v1022, 1.0
        %v1093 = vadd.f32 %v1024, 1.0
        %v1094 = vadd.f32 %v1026, 1.0
        %v1095 = vadd.f32 %v1028, 1.0
        %v1096 = vadd.f32 %v1030, 1.0
        %v1097 = vadd.f32 %v1032, 1.0
        %v1098 = vadd.f32 %v1034, 1.0
        %v1099 = vadd.f32 %v1036, 1.0
        %v1100 = vadd.f32 %v1038, 1.0
        %v1101 = vadd.f32 %v1040, 1.0
        %v1102 = vadd.f32 %v1042, 1.0
        %v1103 = vadd.f32 %v1044, 1.0
        %v1104 = vadd.f32 %v1046, 1.0
        %v1105 = vadd.f32 %v1048, 1.0
        %v1106 = vadd.f32 %v1050, 1.0
        %v1107 = vadd.f32 %v1052, 1.0
        %v1108 = vadd.f32 %v1054, 1.0
        %v1109 = vadd.f32 %v1056, 1.0
        %v1110 = vadd.f32 %v1058, 1.0
        %v1111 = vadd.f32 %v1060, 1.0
        %v1112 = vadd.f32 %v1062, 1.0
        %v1113 = vadd.f32 %v1064, 1.0
        %v1114 = vadd.f32 %v1066, 1.0
        %v1115 = vadd.f32 %v1068, 1.0
        %v1116 = vadd.f32 %v1070, 1.0
        %v1117 = vadd.f32 %v1072, 1.0
        %v1118 = vadd.f32 %v1074, 1.0
        %v1119 = vadd.f32 %v1076, 1.0
        %v1120 = vadd.f32 %v1078, 1.0
        %v1121 = vadd.f32 %v1080, 1.0
        %v1122 = vadd.f32 %v1082, 1.0
        %v1123 = vrcp.pop %v1083
        %v1124 = vmul.f32 1.0, %v1123
        %v1125 = vrcp.pop %v1084
        %v1126 = vmul.f32 1.0, %v1125
        %v1127 = vrcp.pop %v1085
        %v1128 = vmul.f32 1.0, %v1127
        %v1129 = vrcp.pop %v1086
        %v1130 = vmul.f32 1.0, %v1129
        %v1131 = vrcp.pop %v1087
        %v1132 = vmul.f32 1.0, %v1131
        %v1133 = vrcp.pop %v1088
        %v1134 = vmul.f32 1.0, %v1133
        %v1135 = vrcp.pop %v1089
        %v1136 = vmul.f32 1.0, %v1135
        %v1137 = vrcp.pop %v1090
        %v1138 = vmul.f32 1.0, %v1137
        %v1139 = vrcp.pop %v1091
        %v1140 = vmul.f32 1.0, %v1139
        %v1141 = vrcp.pop %v1092
        %v1142 = vmul.f32 1.0, %v1141
        %v1143 = vrcp.pop %v1093
        %v1144 = vmul.f32 1.0, %v1143
        %v1145 = vrcp.pop %v1094
        %v1146 = vmul.f32 1.0, %v1145
        %v1147 = vrcp.pop %v1095
        %v1148 = vmul.f32 1.0, %v1147
        %v1149 = vrcp.pop %v1096
        %v1150 = vmul.f32 1.0, %v1149
        %v1151 = vrcp.pop %v1097
        %v1152 = vmul.f32 1.0, %v1151
        %v1153 = vrcp.pop %v1098
        %v1154 = vmul.f32 1.0, %v1153
        %v1155 = vrcp.pop %v1099
        %v1156 = vmul.f32 1.0, %v1155
        %v1157 = vrcp.pop %v1100
        %v1158 = vmul.f32 1.0, %v1157
        %v1159 = vrcp.pop %v1101
        %v1160 = vmul.f32 1.0, %v1159
        %v1161 = vrcp.pop %v1102
        %v1162 = vmul.f32 1.0, %v1161
        %v1163 = vrcp.pop %v1103
        %v1164 = vmul.f32 1.0, %v1163
        %v1165 = vrcp.pop %v1104
        %v1166 = vmul.f32 1.0, %v1165
        %v1167 = vrcp.pop %v1105
        %v1168 = vmul.f32 1.0, %v1167
        %v1169 = vrcp.pop %v1106
        %v1170 = vmul.f32 1.0, %v1169
        %v1171 = vrcp.pop %v1107
        %v1172 = vmul.f32 1.0, %v1171
        %v1173 = vrcp.pop %v1108
        %v1174 = vmul.f32 1.0, %v1173
        %v1175 = vrcp.pop %v1109
        %v1176 = vmul.f32 1.0, %v1175
        %v1177 = vrcp.pop %v1110
        %v1178 = vmul.f32 1.0, %v1177
        %v1179 = vrcp.pop %v1111
        %v1180 = vmul.f32 1.0, %v1179
        %v1181 = vrcp.pop %v1112
        %v1182 = vmul.f32 1.0, %v1181
        %v1183 = vrcp.pop %v1113
        %v1184 = vmul.f32 1.0, %v1183
        %v1185 = vrcp.pop %v1114
        %v1186 = vmul.f32 1.0, %v1185
        %v1187 = vrcp.pop %v1115
        %v1188 = vmul.f32 1.0, %v1187
        %v1189 = vrcp.pop %v1116
        %v1190 = vmul.f32 1.0, %v1189
        %v1191 = vrcp.pop %v1117
        %v1192 = vmul.f32 1.0, %v1191
        %v1193 = vrcp.pop %v1118
        %v1194 = vmul.f32 1.0, %v1193
        %v1195 = vrcp.pop %v1119
        %v1196 = vmul.f32 1.0, %v1195
        %v1197 = vrcp.pop %v1120
        %v1198 = vmul.f32 1.0, %v1197
        %v1199 = vrcp.pop %v1121
        %v1200 = vmul.f32 1.0, %v1199
        %v1201 = vrcp.pop %v1122
        %v1202 = vmul.f32 1.0, %v1201
        %v1203 = vmul.f32 %v787, %v1124
        %v1204 = vmul.f32 %v789, %v1126
        %v1205 = vmul.f32 %v860, %v1128
        %v1206 = vmul.f32 %v862, %v1130
        %v1207 = vmul.f32 %v933, %v1132
        %v1208 = vmul.f32 %v791, %v1134
        %v1209 = vmul.f32 %v793, %v1136
        %v1210 = vmul.f32 %v864, %v1138
        %v1211 = vmul.f32 %v866, %v1140
        %v1212 = vmul.f32 %v936, %v1142
        %v1213 = vmul.f32 %v797, %v1144
        %v1214 = vmul.f32 %v799, %v1146
        %v1215 = vmul.f32 %v870, %v1148
        %v1216 = vmul.f32 %v872, %v1150
        %v1217 = vmul.f32 %v941, %v1152
        %v1218 = vmul.f32 %v801, %v1154
        %v1219 = vmul.f32 %v803, %v1156
        %v1220 = vmul.f32 %v874, %v1158
        %v1221 = vmul.f32 %v876, %v1160
        %v1222 = vmul.f32 %v944, %v1162
        %v1223 = vmul.f32 %v807, %v1164
        %v1224 = vmul.f32 %v809, %v1166
        %v1225 = vmul.f32 %v880, %v1168
        %v1226 = vmul.f32 %v882, %v1170
        %v1227 = vmul.f32 %v949, %v1172
        %v1228 = vmul.f32 %v811, %v1174
        %v1229 = vmul.f32 %v813, %v1176
        %v1230 = vmul.f32 %v884, %v1178
        %v1231 = vmul.f32 %v886, %v1180
        %v1232 = vmul.f32 %v952, %v1182
        %v1233 = vmul.f32 %v817, %v1184
        %v1234 = vmul.f32 %v819, %v1186
        %v1235 = vmul.f32 %v890, %v1188
        %v1236 = vmul.f32 %v892, %v1190
        %v1237 = vmul.f32 %v957, %v1192
        %v1238 = vmul.f32 %v821, %v1194
        %v1239 = vmul.f32 %v823, %v1196
        %v1240 = vmul.f32 %v894, %v1198
        %v1241 = vmul.f32 %v896, %v1200
        %v1242 = vmul.f32 %v960, %v1202
        %v1243 = vadd.f32 %v1203, %v1208
        %v1244 = vadd.f32 %v1243, %v1213
        %v1245 = vadd.f32 %v1244, %v1218
        %v1246 = vadd.f32 %v1245, %v1223
        %v1247 = vadd.f32 %v1246, %v1228
        %v1248 = vadd.f32 %v1247, %v1233
        %v1249 = vadd.f32 %v1248, %v1238
        %v1250 = vrot.slane %v1249, 4
        %v1251 = vadd.f32 %v1249, %v1250
        %v1252 = vrot.slane %v1251, 2
        %v1253 = vadd.f32 %v1251, %v1252
        %v1254 = vrot.slane %v1253, 1
        %v1255 = vadd.f32 %v1253, %v1254
        %v1256 = vadd.f32 %v1204, %v1209
        %v1257 = vadd.f32 %v1256, %v1214
        %v1258 = vadd.f32 %v1257, %v1219
        %v1259 = vadd.f32 %v1258, %v1224
        %v1260 = vadd.f32 %v1259, %v1229
        %v1261 = vadd.f32 %v1260, %v1234
        %v1262 = vadd.f32 %v1261, %v1239
        %v1263 = vrot.slane %v1262, 4
        %v1264 = vadd.f32 %v1262, %v1263
        %v1265 = vrot.slane %v1264, 2
        %v1266 = vadd.f32 %v1264, %v1265
        %v1267 = vrot.slane %v1266, 1
        %v1268 = vadd.f32 %v1266, %v1267
        %v1269 = vadd.f32 %v1205, %v1210
        %v1270 = vadd.f32 %v1269, %v1215
        %v1271 = vadd.f32 %v1270, %v1220
        %v1272 = vadd.f32 %v1271, %v1225
        %v1273 = vadd.f32 %v1272, %v1230
        %v1274 = vadd.f32 %v1273, %v1235
        %v1275 = vadd.f32 %v1274, %v1240
        %v1276 = vrot.slane %v1275, 4
        %v1277 = vadd.f32 %v1275, %v1276
        %v1278 = vrot.slane %v1277, 2
        %v1279 = vadd.f32 %v1277, %v1278
        %v1280 = vrot.slane %v1279, 1
        %v1281 = vadd.f32 %v1279, %v1280
        %v1282 = vadd.f32 %v1206, %v1211
        %v1283 = vadd.f32 %v1282, %v1216
        %v1284 = vadd.f32 %v1283, %v1221
        %v1285 = vadd.f32 %v1284, %v1226
        %v1286 = vadd.f32 %v1285, %v1231
        %v1287 = vadd.f32 %v1286, %v1236
        %v1288 = vadd.f32 %v1287, %v1241
        %v1289 = vrot.slane %v1288, 4
        %v1290 = vadd.f32 %v1288, %v1289
        %v1291 = vrot.slane %v1290, 2
        %v1292 = vadd.f32 %v1290, %v1291
        %v1293 = vrot.slane %v1292, 1
        %v1294 = vadd.f32 %v1292, %v1293
        %v1295 = vadd.f32 %v1207, %v1212
        %v1296 = vadd.f32 %v1295, %v1217
        %v1297 = vadd.f32 %v1296, %v1222
        %v1298 = vadd.f32 %v1297, %v1227
        %v1299 = vadd.f32 %v1298, %v1232
        %v1300 = vadd.f32 %v1299, %v1237
        %v1301 = vadd.f32 %v1300, %v1242
        %v1302 = vrot.slane %v1301, 4
        %v1303 = vadd.f32 %v1301, %v1302
        %v1304 = vrot.slane %v1303, 2
        %v1305 = vadd.f32 %v1303, %v1304
        %v1306 = vrot.slane %v1305, 1
        %v1307 = vadd.f32 %v1305, %v1306
        %v1308 = vpack.c.bf16 %v1255, %v1255
        %v1309 = vpack.c.bf16 %v1268, %v1268
        %v1310 = vpack.c.bf16 %v1281, %v1281
        %v1311 = vpack.c.bf16 %v1294, %v1294
        %v1312 = vpack.c.bf16 %v1307, %v1307
        %v1313 = vld [vmem:[%s7] sm:$0xf]
        %v1314 = vld [vmem:[%s7 + $0x4] sm:$0xf]
        %v1315 = vld [vmem:[%s7 + $0x8] sm:$0xf]
        %v1316 = vld [vmem:[%s7 + $0xc] sm:$0xf]
        %v1317 = vld [vmem:[%s7 + $0x10] sm:$0xf]
        %v1318 = vld [vmem:[%s7 + $0x14] sm:$0xf]
        %v1319 = vld [vmem:[%s7 + $0x18] sm:$0xf]
        %v1320 = vld [vmem:[%s7 + $0x1c] sm:$0xf]
        %v1321 = vld [vmem:[%s7 + $0x20] sm:$0xf]
        %v1322 = vld [vmem:[%s7 + $0x24] sm:$0xf]
        %v1323 = vld [vmem:[%s7 + $0x28] sm:$0xf]
        %v1324 = vld [vmem:[%s7 + $0x2c] sm:$0xf]
        %v1325 = vld [vmem:[%s7 + $0x30] sm:$0xf]
        %v1326 = vld [vmem:[%s7 + $0x34] sm:$0xf]
        %v1327 = vld [vmem:[%s7 + $0x38] sm:$0xf]
        %v1328 = vld [vmem:[%s7 + $0x3c] sm:$0xf]
        %v1329 = vld [vmem:[%s7 + $0x40] sm:$0xf]
        %v1330 = vld [vmem:[%s7 + $0x44] sm:$0xf]
        %v1331 = vld [vmem:[%s7 + $0x48] sm:$0xf]
        %v1332 = vld [vmem:[%s7 + $0x4c] sm:$0xf]
        %v1333 = vld [vmem:[%s7 + $0x50] sm:$0xf]
        %v1334 = vld [vmem:[%s7 + $0x54] sm:$0xf]
        %v1335 = vld [vmem:[%s7 + $0x58] sm:$0xf]
        %v1336 = vld [vmem:[%s7 + $0x5c] sm:$0xf]
        %v1337 = vld [vmem:[%s7 + $0x60] sm:$0xf]
        %v1338 = vld [vmem:[%s7 + $0x64] sm:$0xf]
        %v1339 = vld [vmem:[%s7 + $0x68] sm:$0xf]
        %v1340 = vld [vmem:[%s7 + $0x6c] sm:$0xf]
        %v1341 = vld [vmem:[%s7 + $0x70] sm:$0xf]
        %v1342 = vld [vmem:[%s7 + $0x74] sm:$0xf]
        %v1343 = vld [vmem:[%s7 + $0x78] sm:$0xf]
        %v1344 = vld [vmem:[%s7 + $0x7c] sm:$0xf]
        %v1345 = vld [vmem:[%s7 + $0x80] sm:$0xf]
        %v1346 = vld [vmem:[%s7 + $0x84] sm:$0xf]
        %v1347 = vld [vmem:[%s7 + $0x88] sm:$0xf]
        %v1348 = vld [vmem:[%s7 + $0x8c] sm:$0xf]
        %v1349 = vld [vmem:[%s7 + $0x90] sm:$0xf]
        %v1350 = vld [vmem:[%s7 + $0x94] sm:$0xf]
        %v1351 = vld [vmem:[%s7 + $0x98] sm:$0xf]
        %v1352 = vld [vmem:[%s7 + $0x9c] sm:$0xf]
        %v1353 = vld [vmem:[%s7 + $0xa0] sm:$0xf]
        %v1354 = vld [vmem:[%s7 + $0xa4] sm:$0xf]
        %v1355 = vld [vmem:[%s7 + $0xa8] sm:$0xf]
        %v1356 = vld [vmem:[%s7 + $0xac] sm:$0xf]
        %v1357 = vld [vmem:[%s7 + $0xb0] sm:$0xf]
        %v1358 = vld [vmem:[%s7 + $0xb4] sm:$0xf]
        %v1359 = vld [vmem:[%s7 + $0xb8] sm:$0xf]
        %v1360 = vld [vmem:[%s7 + $0xbc] sm:$0xf]
        %v1361 = vld [vmem:[%s7 + $0xc0] sm:$0xf]
        %v1362 = vld [vmem:[%s7 + $0xc4] sm:$0xf]
        %v1363 = vld [vmem:[%s7 + $0xc8] sm:$0xf]
        %v1364 = vld [vmem:[%s7 + $0xcc] sm:$0xf]
        %v1365 = vld [vmem:[%s7 + $0xd0] sm:$0xf]
        %v1366 = vld [vmem:[%s7 + $0xd4] sm:$0xf]
        %v1367 = vld [vmem:[%s7 + $0xd8] sm:$0xf]
        %v1368 = vld [vmem:[%s7 + $0xdc] sm:$0xf]
        %v1369 = vld [vmem:[%s7 + $0xe0] sm:$0xf]
        %v1370 = vld [vmem:[%s7 + $0xe4] sm:$0xf]
        %v1371 = vld [vmem:[%s7 + $0xe8] sm:$0xf]
        %v1372 = vld [vmem:[%s7 + $0xec] sm:$0xf]
        %v1373 = vld [vmem:[%s7 + $0xf0] sm:$0xf]
        %v1374 = vld [vmem:[%s7 + $0xf4] sm:$0xf]
        %v1375 = vld [vmem:[%s7 + $0xf8] sm:$0xf]
        %v1376 = vld [vmem:[%s7 + $0xfc] sm:$0xf]
        %v1377 = vld [vmem:[%s7 + $0x100] sm:$0xf]
        %v1378 = vld [vmem:[%s7 + $0x104] sm:$0xf]
        %v1379 = vld [vmem:[%s7 + $0x108] sm:$0xf]
        %v1380 = vld [vmem:[%s7 + $0x10c] sm:$0xf]
        %v1381 = vld [vmem:[%s7 + $0x110] sm:$0xf]
        %v1382 = vld [vmem:[%s7 + $0x114] sm:$0xf]
        %v1383 = vld [vmem:[%s7 + $0x118] sm:$0xf]
        %v1384 = vld [vmem:[%s7 + $0x11c] sm:$0xf]
        %v1385 = vld [vmem:[%s7 + $0x120] sm:$0xf]
        %v1386 = vld [vmem:[%s7 + $0x124] sm:$0xf]
        %v1387 = vld [vmem:[%s7 + $0x128] sm:$0xf]
        %v1388 = vld [vmem:[%s7 + $0x12c] sm:$0xf]
        %v1389 = vld [vmem:[%s7 + $0x130] sm:$0xf]
        %v1390 = vld [vmem:[%s7 + $0x134] sm:$0xf]
        %v1391 = vld [vmem:[%s7 + $0x138] sm:$0xf]
        %v1392 = vld [vmem:[%s7 + $0x13c] sm:$0xf]
        %v1393 = vld [vmem:[%s5 + $0x14] sm:$0xff]
        %v1394 = vld [vmem:[%s5 + $0x1c] sm:$0xff]
        %v1395 = vld [vmem:[%s5 + $0x24] sm:$0xf]
        %v1396 = vld [vmem:[%s5 + $0x3c] sm:$0xff]
        %v1397 = vld [vmem:[%s5 + $0x44] sm:$0xff]
        %v1398 = vld [vmem:[%s5 + $0x4c] sm:$0xf]
        %v1399 = vld [vmem:[%s5 + $0x64] sm:$0xff]
        %v1400 = vld [vmem:[%s5 + $0x6c] sm:$0xff]
        %v1401 = vld [vmem:[%s5 + $0x74] sm:$0xf]
        %v1402 = vld [vmem:[%s5 + $0x8c] sm:$0xff]
        %v1403 = vld [vmem:[%s5 + $0x94] sm:$0xff]
        %v1404 = vld [vmem:[%s5 + $0x9c] sm:$0xf]
        %v1405 = vld [vmem:[%s6 + $0x5] sm:$0x1f]
        %v1407 = vlaneseq
        %v1408 = vshrl.u32 %v1407, 7
        %v1409 = vsub.s32 0, %v1408
        %v1410 = vrot.slane %v1405, %v1409
        %v1411 = vlaneseq
        %v1412 = vshrl.u32 %v1411, 7
        %v1413 = vsub.s32 1, %v1412
        %v1414 = vrot.slane %v1405, %v1413
        %v1415 = vlaneseq
        %v1416 = vshrl.u32 %v1415, 7
        %v1417 = vsub.s32 2, %v1416
        %v1418 = vrot.slane %v1405, %v1417
        %v1419 = vlaneseq
        %v1420 = vshrl.u32 %v1419, 7
        %v1421 = vsub.s32 3, %v1420
        %v1422 = vrot.slane %v1405, %v1421
        %v1423 = vlaneseq
        %v1424 = vshrl.u32 %v1423, 7
        %v1425 = vsub.s32 4, %v1424
        %v1426 = vrot.slane %v1405, %v1425
        %v1444 = vunpack.c.l.b16 %v1393
        %v1445 = vunpack.c.h.b16 %v1393
        %v1446 = vunpack.c.l.b16 %v1394
        %v1447 = vunpack.c.h.b16 %v1394
        %v1448 = vunpack.c.l.b16 %v1395
        %v1449 = vunpack.c.l.b16 %v1396
        %v1450 = vunpack.c.h.b16 %v1396
        %v1451 = vunpack.c.l.b16 %v1397
        %v1452 = vunpack.c.h.b16 %v1397
        %v1453 = vunpack.c.l.b16 %v1398
        %v1454 = vunpack.c.l.b16 %v1399
        %v1455 = vunpack.c.h.b16 %v1399
        %v1456 = vunpack.c.l.b16 %v1400
        %v1457 = vunpack.c.h.b16 %v1400
        %v1458 = vunpack.c.l.b16 %v1401
        %v1459 = vunpack.c.l.b16 %v1402
        %v1460 = vunpack.c.h.b16 %v1402
        %v1461 = vunpack.c.l.b16 %v1403
        %v1462 = vunpack.c.h.b16 %v1403
        %v1463 = vunpack.c.l.b16 %v1404
        %v1464 = vpack.c.b16 %v1449, %v1444
        %v1465 = vpack.c.b16 %v1450, %v1445
        %v1466 = vpack.c.b16 %v1451, %v1446
        %v1467 = vpack.c.b16 %v1452, %v1447
        %v1468 = vpack.c.b16 %v1453, %v1448
        %v1469 = vpack.c.b16 %v1459, %v1454
        %v1470 = vpack.c.b16 %v1460, %v1455
        %v1471 = vpack.c.b16 %v1461, %v1456
        %v1472 = vpack.c.b16 %v1462, %v1457
        %v1473 = vpack.c.b16 %v1463, %v1458
        %1484 = vmatprep.subr.bf16.mxu0 %v1465
        %1485 = vmatpush1.bf16.msra.mxu0 %v1464
        %1486 = vmatprep.subr.bf16.mxu0 %v1470
        %1487 = vmatpush1.bf16.msra.mxu0 %v1469
        %1488 = vmatprep.subr.bf16.mxu0 0
        %1489 = vmatpush1.bf16.msra.mxu0 0
        %1490 = vmatprep.subr.bf16.mxu0 0
        %1491 = vmatpush1.bf16.msra.mxu0 0
        %1492 = vmatprep.subr.bf16.mxu0 0
        %1493 = vmatpush1.bf16.msra.mxu0 0
        %1494 = vmatprep.subr.bf16.mxu0 0
        %1495 = vmatpush1.bf16.msra.mxu0 0
        %1496 = vmatprep.subr.bf16.mxu0 0
        %1497 = vmatpush1.bf16.msra.mxu0 0
        %1498 = vmatprep.subr.bf16.mxu0 0
        %1499 = vmatpush1.bf16.msra.mxu0 0
        %1500 = vmatprep.subr.bf16.mxu0 0
        %1501 = vmatpush1.bf16.msra.mxu0 0
        %1502 = vmatprep.subr.bf16.mxu0 0
        %1503 = vmatpush1.bf16.msra.mxu0 0
        %1504 = vmatprep.subr.bf16.mxu0 0
        %1505 = vmatpush1.bf16.msra.mxu0 0
        %1506 = vmatprep.subr.bf16.mxu0 0
        %1507 = vmatpush1.bf16.msra.mxu0 0
        %1508 = vmatprep.subr.bf16.mxu0 0
        %1509 = vmatpush1.bf16.msra.mxu0 0
        %1510 = vmatprep.subr.bf16.mxu0 0
        %1511 = vmatpush1.bf16.msra.mxu0 0
        %1512 = vmatprep.subr.bf16.mxu0 0
        %1513 = vmatpush1.bf16.msra.mxu0 0
        %1514 = vmatprep.subr.bf16.mxu0 0
        %1515 = vmatpush1.bf16.msra.mxu0 0
        %1516 = vmatprep.mubr.bf16.mxu0 0
        %1517 = vmatmul.mubr.bf16.gmra.mrb[0].mxu0 %v741
        %v1518 = vpop.f32.mrb[0].mxu0
        %v1519 = vadd.f32 %v1410, %v1518
        %v1520 = vpop.f32.mrb[0].mxu0
        %v1521 = vadd.f32 %v1414, %v1520
        %v1522 = vpop.f32.mrb[0].mxu0
        %v1523 = vadd.f32 %v1410, %v1522
        %v1524 = vpop.f32.mrb[0].mxu0
        %v1525 = vadd.f32 %v1414, %v1524
        %1526 = vmatprep.mubr.bf16.mxu0 0
        %1527 = vmatmul.mubr.bf16.gmra.mrb[0].mxu0 %v744
        %v1528 = vpop.f32.mrb[0].mxu0
        %v1529 = vadd.f32 %v1410, %v1528
        %v1530 = vpop.f32.mrb[0].mxu0
        %v1531 = vadd.f32 %v1414, %v1530
        %v1532 = vpop.f32.mrb[0].mxu0
        %v1533 = vadd.f32 %v1410, %v1532
        %v1534 = vpop.f32.mrb[0].mxu0
        %v1535 = vadd.f32 %v1414, %v1534
        %1536 = vmatprep.mubr.bf16.mxu0 0
        %1537 = vmatmul.mubr.bf16.gmra.mrb[0].mxu0 %v747
        %v1538 = vpop.f32.mrb[0].mxu0
        %v1539 = vadd.f32 %v1410, %v1538
        %v1540 = vpop.f32.mrb[0].mxu0
        %v1541 = vadd.f32 %v1414, %v1540
        %v1542 = vpop.f32.mrb[0].mxu0
        %v1543 = vadd.f32 %v1410, %v1542
        %v1544 = vpop.f32.mrb[0].mxu0
        %v1545 = vadd.f32 %v1414, %v1544
        %1546 = vmatprep.mubr.bf16.mxu0 0
        %1547 = vmatmul.mubr.bf16.gmra.mrb[0].mxu0 %v750
        %v1548 = vpop.f32.mrb[0].mxu0
        %v1549 = vadd.f32 %v1410, %v1548
        %v1550 = vpop.f32.mrb[0].mxu0
        %v1551 = vadd.f32 %v1414, %v1550
        %v1552 = vpop.f32.mrb[0].mxu0
        %v1553 = vadd.f32 %v1410, %v1552
        %v1554 = vpop.f32.mrb[0].mxu0
        %v1555 = vadd.f32 %v1414, %v1554
        %1556 = vdwg.mxu0
        %1557 = vmatprep.subr.bf16.mxu0 %v1467
        %1558 = vmatpush1.bf16.msra.mxu0 %v1466
        %1559 = vmatprep.subr.bf16.mxu0 %v1472
        %1560 = vmatpush1.bf16.msra.mxu0 %v1471
        %1561 = vmatprep.subr.bf16.mxu0 0
        %1562 = vmatpush1.bf16.msra.mxu0 0
        %1563 = vmatprep.subr.bf16.mxu0 0
        %1564 = vmatpush1.bf16.msra.mxu0 0
        %1565 = vmatprep.subr.bf16.mxu0 0
        %1566 = vmatpush1.bf16.msra.mxu0 0
        %1567 = vmatprep.subr.bf16.mxu0 0
        %1568 = vmatpush1.bf16.msra.mxu0 0
        %1569 = vmatprep.subr.bf16.mxu0 0
        %1570 = vmatpush1.bf16.msra.mxu0 0
        %1571 = vmatprep.subr.bf16.mxu0 0
        %1572 = vmatpush1.bf16.msra.mxu0 0
        %1573 = vmatprep.subr.bf16.mxu0 0
        %1574 = vmatpush1.bf16.msra.mxu0 0
        %1575 = vmatprep.subr.bf16.mxu0 0
        %1576 = vmatpush1.bf16.msra.mxu0 0
        %1577 = vmatprep.subr.bf16.mxu0 0
        %1578 = vmatpush1.bf16.msra.mxu0 0
        %1579 = vmatprep.subr.bf16.mxu0 0
        %1580 = vmatpush1.bf16.msra.mxu0 0
        %1581 = vmatprep.subr.bf16.mxu0 0
        %1582 = vmatpush1.bf16.msra.mxu0 0
        %1583 = vmatprep.subr.bf16.mxu0 0
        %1584 = vmatpush1.bf16.msra.mxu0 0
        %1585 = vmatprep.subr.bf16.mxu0 0
        %1586 = vmatpush1.bf16.msra.mxu0 0
        %1587 = vmatprep.subr.bf16.mxu0 0
        %1588 = vmatpush1.bf16.msra.mxu0 0
        %1589 = vmatprep.mubr.bf16.mxu0 0
        %1590 = vmatmul.mubr.bf16.gmra.mrb[0].mxu0 %v741
        %v1591 = vpop.f32.mrb[0].mxu0
        %v1592 = vadd.f32 %v1418, %v1591
        %v1593 = vpop.f32.mrb[0].mxu0
        %v1594 = vadd.f32 %v1422, %v1593
        %v1595 = vpop.f32.mrb[0].mxu0
        %v1596 = vadd.f32 %v1418, %v1595
        %v1597 = vpop.f32.mrb[0].mxu0
        %v1598 = vadd.f32 %v1422, %v1597
        %1599 = vmatprep.mubr.bf16.mxu0 0
        %1600 = vmatmul.mubr.bf16.gmra.mrb[0].mxu0 %v744
        %v1601 = vpop.f32.mrb[0].mxu0
        %v1602 = vadd.f32 %v1418, %v1601
        %v1603 = vpop.f32.mrb[0].mxu0
        %v1604 = vadd.f32 %v1422, %v1603
        %v1605 = vpop.f32.mrb[0].mxu0
        %v1606 = vadd.f32 %v1418, %v1605
        %v1607 = vpop.f32.mrb[0].mxu0
        %v1608 = vadd.f32 %v1422, %v1607
        %1609 = vmatprep.mubr.bf16.mxu0 0
        %1610 = vmatmul.mubr.bf16.gmra.mrb[0].mxu0 %v747
        %v1611 = vpop.f32.mrb[0].mxu0
        %v1612 = vadd.f32 %v1418, %v1611
        %v1613 = vpop.f32.mrb[0].mxu0
        %v1614 = vadd.f32 %v1422, %v1613
        %v1615 = vpop.f32.mrb[0].mxu0
        %v1616 = vadd.f32 %v1418, %v1615
        %v1617 = vpop.f32.mrb[0].mxu0
        %v1618 = vadd.f32 %v1422, %v1617
        %1619 = vmatprep.mubr.bf16.mxu0 0
        %1620 = vmatmul.mubr.bf16.gmra.mrb[0].mxu0 %v750
        %v1621 = vpop.f32.mrb[0].mxu0
        %v1622 = vadd.f32 %v1418, %v1621
        %v1623 = vpop.f32.mrb[0].mxu0
        %v1624 = vadd.f32 %v1422, %v1623
        %v1625 = vpop.f32.mrb[0].mxu0
        %v1626 = vadd.f32 %v1418, %v1625
        %v1627 = vpop.f32.mrb[0].mxu0
        %v1628 = vadd.f32 %v1422, %v1627
        %1629 = vdwg.mxu0
        %1630 = vmatprep.subr.bf16.mxu0 0
        %1631 = vmatpush1.bf16.msra.mxu0 %v1468
        %1632 = vmatprep.subr.bf16.mxu0 0
        %1633 = vmatpush1.bf16.msra.mxu0 %v1473
        %1634 = vmatprep.subr.bf16.mxu0 0
        %1635 = vmatpush1.bf16.msra.mxu0 0
        %1636 = vmatprep.subr.bf16.mxu0 0
        %1637 = vmatpush1.bf16.msra.mxu0 0
        %1638 = vmatprep.subr.bf16.mxu0 0
        %1639 = vmatpush1.bf16.msra.mxu0 0
        %1640 = vmatprep.subr.bf16.mxu0 0
        %1641 = vmatpush1.bf16.msra.mxu0 0
        %1642 = vmatprep.subr.bf16.mxu0 0
        %1643 = vmatpush1.bf16.msra.mxu0 0
        %1644 = vmatprep.subr.bf16.mxu0 0
        %1645 = vmatpush1.bf16.msra.mxu0 0
        %1646 = vmatprep.subr.bf16.mxu0 0
        %1647 = vmatpush1.bf16.msra.mxu0 0
        %1648 = vmatprep.subr.bf16.mxu0 0
        %1649 = vmatpush1.bf16.msra.mxu0 0
        %1650 = vmatprep.subr.bf16.mxu0 0
        %1651 = vmatpush1.bf16.msra.mxu0 0
        %1652 = vmatprep.subr.bf16.mxu0 0
        %1653 = vmatpush1.bf16.msra.mxu0 0
        %1654 = vmatprep.subr.bf16.mxu0 0
        %1655 = vmatpush1.bf16.msra.mxu0 0
        %1656 = vmatprep.subr.bf16.mxu0 0
        %1657 = vmatpush1.bf16.msra.mxu0 0
        %1658 = vmatprep.subr.bf16.mxu0 0
        %1659 = vmatpush1.bf16.msra.mxu0 0
        %1660 = vmatprep.subr.bf16.mxu0 0
        %1661 = vmatpush1.bf16.msra.mxu0 0
        %1662 = vmatprep.mubr.bf16.mxu0 0
        %1663 = vmatmul.mubr.bf16.gmra.mrb[0].mxu0 %v741
        %v1664 = vpop.f32.mrb[0].mxu0
        %v1665 = vadd.f32 %v1426, %v1664
        %v1666 = vpop.f32.mrb[0].mxu0
        %v1667 = vpop.f32.mrb[0].mxu0
        %v1668 = vadd.f32 %v1426, %v1667
        %v1669 = vpop.f32.mrb[0].mxu0
        %1670 = vmatprep.mubr.bf16.mxu0 0
        %1671 = vmatmul.mubr.bf16.gmra.mrb[0].mxu0 %v744
        %v1672 = vpop.f32.mrb[0].mxu0
        %v1673 = vadd.f32 %v1426, %v1672
        %v1674 = vpop.f32.mrb[0].mxu0
        %v1675 = vpop.f32.mrb[0].mxu0
        %v1676 = vadd.f32 %v1426, %v1675
        %v1677 = vpop.f32.mrb[0].mxu0
        %1678 = vmatprep.mubr.bf16.mxu0 0
        %1679 = vmatmul.mubr.bf16.gmra.mrb[0].mxu0 %v747
        %v1680 = vpop.f32.mrb[0].mxu0
        %v1681 = vadd.f32 %v1426, %v1680
        %v1682 = vpop.f32.mrb[0].mxu0
        %v1683 = vpop.f32.mrb[0].mxu0
        %v1684 = vadd.f32 %v1426, %v1683
        %v1685 = vpop.f32.mrb[0].mxu0
        %1686 = vmatprep.mubr.bf16.mxu0 0
        %1687 = vmatmul.mubr.bf16.gmra.mrb[0].mxu0 %v750
        %v1688 = vpop.f32.mrb[0].mxu0
        %v1689 = vadd.f32 %v1426, %v1688
        %v1690 = vpop.f32.mrb[0].mxu0
        %v1691 = vpop.f32.mrb[0].mxu0
        %v1692 = vadd.f32 %v1426, %v1691
        %v1693 = vpop.f32.mrb[0].mxu0
        %1694 = vdwg.mxu0
        %v1695 = vxor.u32 %v1519, 2147483648
        %v1696 = vxor.u32 %v1521, 2147483648
        %v1697 = vxor.u32 %v1592, 2147483648
        %v1698 = vxor.u32 %v1594, 2147483648
        %v1699 = vxor.u32 %v1665, 2147483648
        %v1700 = vxor.u32 %v1523, 2147483648
        %v1701 = vxor.u32 %v1525, 2147483648
        %v1702 = vxor.u32 %v1596, 2147483648
        %v1703 = vxor.u32 %v1598, 2147483648
        %v1704 = vxor.u32 %v1668, 2147483648
        %v1705 = vxor.u32 %v1529, 2147483648
        %v1706 = vxor.u32 %v1531, 2147483648
        %v1707 = vxor.u32 %v1602, 2147483648
        %v1708 = vxor.u32 %v1604, 2147483648
        %v1709 = vxor.u32 %v1673, 2147483648
        %v1710 = vxor.u32 %v1533, 2147483648
        %v1711 = vxor.u32 %v1535, 2147483648
        %v1712 = vxor.u32 %v1606, 2147483648
        %v1713 = vxor.u32 %v1608, 2147483648
        %v1714 = vxor.u32 %v1676, 2147483648
        %v1715 = vxor.u32 %v1539, 2147483648
        %v1716 = vxor.u32 %v1541, 2147483648
        %v1717 = vxor.u32 %v1612, 2147483648
        %v1718 = vxor.u32 %v1614, 2147483648
        %v1719 = vxor.u32 %v1681, 2147483648
        %v1720 = vxor.u32 %v1543, 2147483648
        %v1721 = vxor.u32 %v1545, 2147483648
        %v1722 = vxor.u32 %v1616, 2147483648
        %v1723 = vxor.u32 %v1618, 2147483648
        %v1724 = vxor.u32 %v1684, 2147483648
        %v1725 = vxor.u32 %v1549, 2147483648
        %v1726 = vxor.u32 %v1551, 2147483648
        %v1727 = vxor.u32 %v1622, 2147483648
        %v1728 = vxor.u32 %v1624, 2147483648
        %v1729 = vxor.u32 %v1689, 2147483648
        %v1730 = vxor.u32 %v1553, 2147483648
        %v1731 = vxor.u32 %v1555, 2147483648
        %v1732 = vxor.u32 %v1626, 2147483648
        %v1733 = vxor.u32 %v1628, 2147483648
        %v1734 = vxor.u32 %v1692, 2147483648
        %v1735 = vmul.f32 %v1695, 1.442695
        %v1736 = vpow.pop %v1735
        %v1737 = vmul.f32 %v1696, 1.442695
        %v1738 = vpow.pop %v1737
        %v1739 = vmul.f32 %v1697, 1.442695
        %v1740 = vpow.pop %v1739
        %v1741 = vmul.f32 %v1698, 1.442695
        %v1742 = vpow.pop %v1741
        %v1743 = vmul.f32 %v1699, 1.442695
        %v1744 = vpow.pop %v1743
        %v1745 = vmul.f32 %v1700, 1.442695
        %v1746 = vpow.pop %v1745
        %v1747 = vmul.f32 %v1701, 1.442695
        %v1748 = vpow.pop %v1747
        %v1749 = vmul.f32 %v1702, 1.442695
        %v1750 = vpow.pop %v1749
        %v1751 = vmul.f32 %v1703, 1.442695
        %v1752 = vpow.pop %v1751
        %v1753 = vmul.f32 %v1704, 1.442695
        %v1754 = vpow.pop %v1753
        %v1755 = vmul.f32 %v1705, 1.442695
        %v1756 = vpow.pop %v1755
        %v1757 = vmul.f32 %v1706, 1.442695
        %v1758 = vpow.pop %v1757
        %v1759 = vmul.f32 %v1707, 1.442695
        %v1760 = vpow.pop %v1759
        %v1761 = vmul.f32 %v1708, 1.442695
        %v1762 = vpow.pop %v1761
        %v1763 = vmul.f32 %v1709, 1.442695
        %v1764 = vpow.pop %v1763
        %v1765 = vmul.f32 %v1710, 1.442695
        %v1766 = vpow.pop %v1765
        %v1767 = vmul.f32 %v1711, 1.442695
        %v1768 = vpow.pop %v1767
        %v1769 = vmul.f32 %v1712, 1.442695
        %v1770 = vpow.pop %v1769
        %v1771 = vmul.f32 %v1713, 1.442695
        %v1772 = vpow.pop %v1771
        %v1773 = vmul.f32 %v1714, 1.442695
        %v1774 = vpow.pop %v1773
        %v1775 = vmul.f32 %v1715, 1.442695
        %v1776 = vpow.pop %v1775
        %v1777 = vmul.f32 %v1716, 1.442695
        %v1778 = vpow.pop %v1777
        %v1779 = vmul.f32 %v1717, 1.442695
        %v1780 = vpow.pop %v1779
        %v1781 = vmul.f32 %v1718, 1.442695
        %v1782 = vpow.pop %v1781
        %v1783 = vmul.f32 %v1719, 1.442695
        %v1784 = vpow.pop %v1783
        %v1785 = vmul.f32 %v1720, 1.442695
        %v1786 = vpow.pop %v1785
        %v1787 = vmul.f32 %v1721, 1.442695
        %v1788 = vpow.pop %v1787
        %v1789 = vmul.f32 %v1722, 1.442695
        %v1790 = vpow.pop %v1789
        %v1791 = vmul.f32 %v1723, 1.442695
        %v1792 = vpow.pop %v1791
        %v1793 = vmul.f32 %v1724, 1.442695
        %v1794 = vpow.pop %v1793
        %v1795 = vmul.f32 %v1725, 1.442695
        %v1796 = vpow.pop %v1795
        %v1797 = vmul.f32 %v1726, 1.442695
        %v1798 = vpow.pop %v1797
        %v1799 = vmul.f32 %v1727, 1.442695
        %v1800 = vpow.pop %v1799
        %v1801 = vmul.f32 %v1728, 1.442695
        %v1802 = vpow.pop %v1801
        %v1803 = vmul.f32 %v1729, 1.442695
        %v1804 = vpow.pop %v1803
        %v1805 = vmul.f32 %v1730, 1.442695
        %v1806 = vpow.pop %v1805
        %v1807 = vmul.f32 %v1731, 1.442695
        %v1808 = vpow.pop %v1807
        %v1809 = vmul.f32 %v1732, 1.442695
        %v1810 = vpow.pop %v1809
        %v1811 = vmul.f32 %v1733, 1.442695
        %v1812 = vpow.pop %v1811
        %v1813 = vmul.f32 %v1734, 1.442695
        %v1814 = vpow.pop %v1813
        %v1815 = vadd.f32 %v1736, 1.0
        %v1816 = vadd.f32 %v1738, 1.0
        %v1817 = vadd.f32 %v1740, 1.0
        %v1818 = vadd.f32 %v1742, 1.0
        %v1819 = vadd.f32 %v1744, 1.0
        %v1820 = vadd.f32 %v1746, 1.0
        %v1821 = vadd.f32 %v1748, 1.0
        %v1822 = vadd.f32 %v1750, 1.0
        %v1823 = vadd.f32 %v1752, 1.0
        %v1824 = vadd.f32 %v1754, 1.0
        %v1825 = vadd.f32 %v1756, 1.0
        %v1826 = vadd.f32 %v1758, 1.0
        %v1827 = vadd.f32 %v1760, 1.0
        %v1828 = vadd.f32 %v1762, 1.0
        %v1829 = vadd.f32 %v1764, 1.0
        %v1830 = vadd.f32 %v1766, 1.0
        %v1831 = vadd.f32 %v1768, 1.0
        %v1832 = vadd.f32 %v1770, 1.0
        %v1833 = vadd.f32 %v1772, 1.0
        %v1834 = vadd.f32 %v1774, 1.0
        %v1835 = vadd.f32 %v1776, 1.0
        %v1836 = vadd.f32 %v1778, 1.0
        %v1837 = vadd.f32 %v1780, 1.0
        %v1838 = vadd.f32 %v1782, 1.0
        %v1839 = vadd.f32 %v1784, 1.0
        %v1840 = vadd.f32 %v1786, 1.0
        %v1841 = vadd.f32 %v1788, 1.0
        %v1842 = vadd.f32 %v1790, 1.0
        %v1843 = vadd.f32 %v1792, 1.0
        %v1844 = vadd.f32 %v1794, 1.0
        %v1845 = vadd.f32 %v1796, 1.0
        %v1846 = vadd.f32 %v1798, 1.0
        %v1847 = vadd.f32 %v1800, 1.0
        %v1848 = vadd.f32 %v1802, 1.0
        %v1849 = vadd.f32 %v1804, 1.0
        %v1850 = vadd.f32 %v1806, 1.0
        %v1851 = vadd.f32 %v1808, 1.0
        %v1852 = vadd.f32 %v1810, 1.0
        %v1853 = vadd.f32 %v1812, 1.0
        %v1854 = vadd.f32 %v1814, 1.0
        %v1855 = vrcp.pop %v1815
        %v1856 = vmul.f32 1.0, %v1855
        %v1857 = vrcp.pop %v1816
        %v1858 = vmul.f32 1.0, %v1857
        %v1859 = vrcp.pop %v1817
        %v1860 = vmul.f32 1.0, %v1859
        %v1861 = vrcp.pop %v1818
        %v1862 = vmul.f32 1.0, %v1861
        %v1863 = vrcp.pop %v1819
        %v1864 = vmul.f32 1.0, %v1863
        %v1865 = vrcp.pop %v1820
        %v1866 = vmul.f32 1.0, %v1865
        %v1867 = vrcp.pop %v1821
        %v1868 = vmul.f32 1.0, %v1867
        %v1869 = vrcp.pop %v1822
        %v1870 = vmul.f32 1.0, %v1869
        %v1871 = vrcp.pop %v1823
        %v1872 = vmul.f32 1.0, %v1871
        %v1873 = vrcp.pop %v1824
        %v1874 = vmul.f32 1.0, %v1873
        %v1875 = vrcp.pop %v1825
        %v1876 = vmul.f32 1.0, %v1875
        %v1877 = vrcp.pop %v1826
        %v1878 = vmul.f32 1.0, %v1877
        %v1879 = vrcp.pop %v1827
        %v1880 = vmul.f32 1.0, %v1879
        %v1881 = vrcp.pop %v1828
        %v1882 = vmul.f32 1.0, %v1881
        %v1883 = vrcp.pop %v1829
        %v1884 = vmul.f32 1.0, %v1883
        %v1885 = vrcp.pop %v1830
        %v1886 = vmul.f32 1.0, %v1885
        %v1887 = vrcp.pop %v1831
        %v1888 = vmul.f32 1.0, %v1887
        %v1889 = vrcp.pop %v1832
        %v1890 = vmul.f32 1.0, %v1889
        %v1891 = vrcp.pop %v1833
        %v1892 = vmul.f32 1.0, %v1891
        %v1893 = vrcp.pop %v1834
        %v1894 = vmul.f32 1.0, %v1893
        %v1895 = vrcp.pop %v1835
        %v1896 = vmul.f32 1.0, %v1895
        %v1897 = vrcp.pop %v1836
        %v1898 = vmul.f32 1.0, %v1897
        %v1899 = vrcp.pop %v1837
        %v1900 = vmul.f32 1.0, %v1899
        %v1901 = vrcp.pop %v1838
        %v1902 = vmul.f32 1.0, %v1901
        %v1903 = vrcp.pop %v1839
        %v1904 = vmul.f32 1.0, %v1903
        %v1905 = vrcp.pop %v1840
        %v1906 = vmul.f32 1.0, %v1905
        %v1907 = vrcp.pop %v1841
        %v1908 = vmul.f32 1.0, %v1907
        %v1909 = vrcp.pop %v1842
        %v1910 = vmul.f32 1.0, %v1909
        %v1911 = vrcp.pop %v1843
        %v1912 = vmul.f32 1.0, %v1911
        %v1913 = vrcp.pop %v1844
        %v1914 = vmul.f32 1.0, %v1913
        %v1915 = vrcp.pop %v1845
        %v1916 = vmul.f32 1.0, %v1915
        %v1917 = vrcp.pop %v1846
        %v1918 = vmul.f32 1.0, %v1917
        %v1919 = vrcp.pop %v1847
        %v1920 = vmul.f32 1.0, %v1919
        %v1921 = vrcp.pop %v1848
        %v1922 = vmul.f32 1.0, %v1921
        %v1923 = vrcp.pop %v1849
        %v1924 = vmul.f32 1.0, %v1923
        %v1925 = vrcp.pop %v1850
        %v1926 = vmul.f32 1.0, %v1925
        %v1927 = vrcp.pop %v1851
        %v1928 = vmul.f32 1.0, %v1927
        %v1929 = vrcp.pop %v1852
        %v1930 = vmul.f32 1.0, %v1929
        %v1931 = vrcp.pop %v1853
        %v1932 = vmul.f32 1.0, %v1931
        %v1933 = vrcp.pop %v1854
        %v1934 = vmul.f32 1.0, %v1933
        %v1935 = vmul.f32 %v1519, %v1856
        %v1936 = vmul.f32 %v1521, %v1858
        %v1937 = vmul.f32 %v1592, %v1860
        %v1938 = vmul.f32 %v1594, %v1862
        %v1939 = vmul.f32 %v1665, %v1864
        %v1940 = vmul.f32 %v1523, %v1866
        %v1941 = vmul.f32 %v1525, %v1868
        %v1942 = vmul.f32 %v1596, %v1870
        %v1943 = vmul.f32 %v1598, %v1872
        %v1944 = vmul.f32 %v1668, %v1874
        %v1945 = vmul.f32 %v1529, %v1876
        %v1946 = vmul.f32 %v1531, %v1878
        %v1947 = vmul.f32 %v1602, %v1880
        %v1948 = vmul.f32 %v1604, %v1882
        %v1949 = vmul.f32 %v1673, %v1884
        %v1950 = vmul.f32 %v1533, %v1886
        %v1951 = vmul.f32 %v1535, %v1888
        %v1952 = vmul.f32 %v1606, %v1890
        %v1953 = vmul.f32 %v1608, %v1892
        %v1954 = vmul.f32 %v1676, %v1894
        %v1955 = vmul.f32 %v1539, %v1896
        %v1956 = vmul.f32 %v1541, %v1898
        %v1957 = vmul.f32 %v1612, %v1900
        %v1958 = vmul.f32 %v1614, %v1902
        %v1959 = vmul.f32 %v1681, %v1904
        %v1960 = vmul.f32 %v1543, %v1906
        %v1961 = vmul.f32 %v1545, %v1908
        %v1962 = vmul.f32 %v1616, %v1910
        %v1963 = vmul.f32 %v1618, %v1912
        %v1964 = vmul.f32 %v1684, %v1914
        %v1965 = vmul.f32 %v1549, %v1916
        %v1966 = vmul.f32 %v1551, %v1918
        %v1967 = vmul.f32 %v1622, %v1920
        %v1968 = vmul.f32 %v1624, %v1922
        %v1969 = vmul.f32 %v1689, %v1924
        %v1970 = vmul.f32 %v1553, %v1926
        %v1971 = vmul.f32 %v1555, %v1928
        %v1972 = vmul.f32 %v1626, %v1930
        %v1973 = vmul.f32 %v1628, %v1932
        %v1974 = vmul.f32 %v1692, %v1934
        %v1975 = vadd.f32 %v1935, %v1940
        %v1976 = vadd.f32 %v1975, %v1945
        %v1977 = vadd.f32 %v1976, %v1950
        %v1978 = vadd.f32 %v1977, %v1955
        %v1979 = vadd.f32 %v1978, %v1960
        %v1980 = vadd.f32 %v1979, %v1965
        %v1981 = vadd.f32 %v1980, %v1970
        %v1982 = vrot.slane %v1981, 4
        %v1983 = vadd.f32 %v1981, %v1982
        %v1984 = vrot.slane %v1983, 2
        %v1985 = vadd.f32 %v1983, %v1984
        %v1986 = vrot.slane %v1985, 1
        %v1987 = vadd.f32 %v1985, %v1986
        %v1988 = vadd.f32 %v1936, %v1941
        %v1989 = vadd.f32 %v1988, %v1946
        %v1990 = vadd.f32 %v1989, %v1951
        %v1991 = vadd.f32 %v1990, %v1956
        %v1992 = vadd.f32 %v1991, %v1961
        %v1993 = vadd.f32 %v1992, %v1966
        %v1994 = vadd.f32 %v1993, %v1971
        %v1995 = vrot.slane %v1994, 4
        %v1996 = vadd.f32 %v1994, %v1995
        %v1997 = vrot.slane %v1996, 2
        %v1998 = vadd.f32 %v1996, %v1997
        %v1999 = vrot.slane %v1998, 1
        %v2000 = vadd.f32 %v1998, %v1999
        %v2001 = vadd.f32 %v1937, %v1942
        %v2002 = vadd.f32 %v2001, %v1947
        %v2003 = vadd.f32 %v2002, %v1952
        %v2004 = vadd.f32 %v2003, %v1957
        %v2005 = vadd.f32 %v2004, %v1962
        %v2006 = vadd.f32 %v2005, %v1967
        %v2007 = vadd.f32 %v2006, %v1972
        %v2008 = vrot.slane %v2007, 4
        %v2009 = vadd.f32 %v2007, %v2008
        %v2010 = vrot.slane %v2009, 2
        %v2011 = vadd.f32 %v2009, %v2010
        %v2012 = vrot.slane %v2011, 1
        %v2013 = vadd.f32 %v2011, %v2012
        %v2014 = vadd.f32 %v1938, %v1943
        %v2015 = vadd.f32 %v2014, %v1948
        %v2016 = vadd.f32 %v2015, %v1953
        %v2017 = vadd.f32 %v2016, %v1958
        %v2018 = vadd.f32 %v2017, %v1963
        %v2019 = vadd.f32 %v2018, %v1968
        %v2020 = vadd.f32 %v2019, %v1973
        %v2021 = vrot.slane %v2020, 4
        %v2022 = vadd.f32 %v2020, %v2021
        %v2023 = vrot.slane %v2022, 2
        %v2024 = vadd.f32 %v2022, %v2023
        %v2025 = vrot.slane %v2024, 1
        %v2026 = vadd.f32 %v2024, %v2025
        %v2027 = vadd.f32 %v1939, %v1944
        %v2028 = vadd.f32 %v2027, %v1949
        %v2029 = vadd.f32 %v2028, %v1954
        %v2030 = vadd.f32 %v2029, %v1959
        %v2031 = vadd.f32 %v2030, %v1964
        %v2032 = vadd.f32 %v2031, %v1969
        %v2033 = vadd.f32 %v2032, %v1974
        %v2034 = vrot.slane %v2033, 4
        %v2035 = vadd.f32 %v2033, %v2034
        %v2036 = vrot.slane %v2035, 2
        %v2037 = vadd.f32 %v2035, %v2036
        %v2038 = vrot.slane %v2037, 1
        %v2039 = vadd.f32 %v2037, %v2038
        %v2040 = vpack.c.bf16 %v1987, %v1987
        %v2041 = vpack.c.bf16 %v2000, %v2000
        %v2042 = vpack.c.bf16 %v2013, %v2013
        %v2043 = vpack.c.bf16 %v2026, %v2026
        %v2044 = vpack.c.bf16 %v2039, %v2039
        %v2045 = vld [vmem:[%s7 + $0x140] sm:$0xf]
        %v2046 = vld [vmem:[%s7 + $0x144] sm:$0xf]
        %v2047 = vld [vmem:[%s7 + $0x148] sm:$0xf]
        %v2048 = vld [vmem:[%s7 + $0x14c] sm:$0xf]
        %v2049 = vld [vmem:[%s7 + $0x150] sm:$0xf]
        %v2050 = vld [vmem:[%s7 + $0x154] sm:$0xf]
        %v2051 = vld [vmem:[%s7 + $0x158] sm:$0xf]
        %v2052 = vld [vmem:[%s7 + $0x15c] sm:$0xf]
        %v2053 = vld [vmem:[%s7 + $0x160] sm:$0xf]
        %v2054 = vld [vmem:[%s7 + $0x164] sm:$0xf]
        %v2055 = vld [vmem:[%s7 + $0x168] sm:$0xf]
        %v2056 = vld [vmem:[%s7 + $0x16c] sm:$0xf]
        %v2057 = vld [vmem:[%s7 + $0x170] sm:$0xf]
        %v2058 = vld [vmem:[%s7 + $0x174] sm:$0xf]
        %v2059 = vld [vmem:[%s7 + $0x178] sm:$0xf]
        %v2060 = vld [vmem:[%s7 + $0x17c] sm:$0xf]
        %v2061 = vld [vmem:[%s7 + $0x180] sm:$0xf]
        %v2062 = vld [vmem:[%s7 + $0x184] sm:$0xf]
        %v2063 = vld [vmem:[%s7 + $0x188] sm:$0xf]
        %v2064 = vld [vmem:[%s7 + $0x18c] sm:$0xf]
        %v2065 = vld [vmem:[%s7 + $0x190] sm:$0xf]
        %v2066 = vld [vmem:[%s7 + $0x194] sm:$0xf]
        %v2067 = vld [vmem:[%s7 + $0x198] sm:$0xf]
        %v2068 = vld [vmem:[%s7 + $0x19c] sm:$0xf]
        %v2069 = vld [vmem:[%s7 + $0x1a0] sm:$0xf]
        %v2070 = vld [vmem:[%s7 + $0x1a4] sm:$0xf]
        %v2071 = vld [vmem:[%s7 + $0x1a8] sm:$0xf]
        %v2072 = vld [vmem:[%s7 + $0x1ac] sm:$0xf]
        %v2073 = vld [vmem:[%s7 + $0x1b0] sm:$0xf]
        %v2074 = vld [vmem:[%s7 + $0x1b4] sm:$0xf]
        %v2075 = vld [vmem:[%s7 + $0x1b8] sm:$0xf]
        %v2076 = vld [vmem:[%s7 + $0x1bc] sm:$0xf]
        %v2077 = vld [vmem:[%s7 + $0x1c0] sm:$0xf]
        %v2078 = vld [vmem:[%s7 + $0x1c4] sm:$0xf]
        %v2079 = vld [vmem:[%s7 + $0x1c8] sm:$0xf]
        %v2080 = vld [vmem:[%s7 + $0x1cc] sm:$0xf]
        %v2081 = vld [vmem:[%s7 + $0x1d0] sm:$0xf]
        %v2082 = vld [vmem:[%s7 + $0x1d4] sm:$0xf]
        %v2083 = vld [vmem:[%s7 + $0x1d8] sm:$0xf]
        %v2084 = vld [vmem:[%s7 + $0x1dc] sm:$0xf]
        %v2085 = vld [vmem:[%s7 + $0x1e0] sm:$0xf]
        %v2086 = vld [vmem:[%s7 + $0x1e4] sm:$0xf]
        %v2087 = vld [vmem:[%s7 + $0x1e8] sm:$0xf]
        %v2088 = vld [vmem:[%s7 + $0x1ec] sm:$0xf]
        %v2089 = vld [vmem:[%s7 + $0x1f0] sm:$0xf]
        %v2090 = vld [vmem:[%s7 + $0x1f4] sm:$0xf]
        %v2091 = vld [vmem:[%s7 + $0x1f8] sm:$0xf]
        %v2092 = vld [vmem:[%s7 + $0x1fc] sm:$0xf]
        %v2093 = vld [vmem:[%s7 + $0x200] sm:$0xf]
        %v2094 = vld [vmem:[%s7 + $0x204] sm:$0xf]
        %v2095 = vld [vmem:[%s7 + $0x208] sm:$0xf]
        %v2096 = vld [vmem:[%s7 + $0x20c] sm:$0xf]
        %v2097 = vld [vmem:[%s7 + $0x210] sm:$0xf]
        %v2098 = vld [vmem:[%s7 + $0x214] sm:$0xf]
        %v2099 = vld [vmem:[%s7 + $0x218] sm:$0xf]
        %v2100 = vld [vmem:[%s7 + $0x21c] sm:$0xf]
        %v2101 = vld [vmem:[%s7 + $0x220] sm:$0xf]
        %v2102 = vld [vmem:[%s7 + $0x224] sm:$0xf]
        %v2103 = vld [vmem:[%s7 + $0x228] sm:$0xf]
        %v2104 = vld [vmem:[%s7 + $0x22c] sm:$0xf]
        %v2105 = vld [vmem:[%s7 + $0x230] sm:$0xf]
        %v2106 = vld [vmem:[%s7 + $0x234] sm:$0xf]
        %v2107 = vld [vmem:[%s7 + $0x238] sm:$0xf]
        %v2108 = vld [vmem:[%s7 + $0x23c] sm:$0xf]
        %v2109 = vld [vmem:[%s7 + $0x240] sm:$0xf]
        %v2110 = vld [vmem:[%s7 + $0x244] sm:$0xf]
        %v2111 = vld [vmem:[%s7 + $0x248] sm:$0xf]
        %v2112 = vld [vmem:[%s7 + $0x24c] sm:$0xf]
        %v2113 = vld [vmem:[%s7 + $0x250] sm:$0xf]
        %v2114 = vld [vmem:[%s7 + $0x254] sm:$0xf]
        %v2115 = vld [vmem:[%s7 + $0x258] sm:$0xf]
        %v2116 = vld [vmem:[%s7 + $0x25c] sm:$0xf]
        %v2117 = vld [vmem:[%s7 + $0x260] sm:$0xf]
        %v2118 = vld [vmem:[%s7 + $0x264] sm:$0xf]
        %v2119 = vld [vmem:[%s7 + $0x268] sm:$0xf]
        %v2120 = vld [vmem:[%s7 + $0x26c] sm:$0xf]
        %v2121 = vld [vmem:[%s7 + $0x270] sm:$0xf]
        %v2122 = vld [vmem:[%s7 + $0x274] sm:$0xf]
        %v2123 = vld [vmem:[%s7 + $0x278] sm:$0xf]
        %v2124 = vld [vmem:[%s7 + $0x27c] sm:$0xf]
        %v2205 = vunpack.c.l.b16 %v2045
        %v2206 = vunpack.c.l.b16 %v2046
        %v2207 = vunpack.c.l.b16 %v2047
        %v2208 = vunpack.c.l.b16 %v2048
        %v2209 = vunpack.c.l.b16 %v2049
        %v2210 = vunpack.c.l.b16 %v2050
        %v2211 = vunpack.c.l.b16 %v2051
        %v2212 = vunpack.c.l.b16 %v2052
        %v2213 = vunpack.c.l.b16 %v2053
        %v2214 = vunpack.c.l.b16 %v2054
        %v2215 = vunpack.c.l.b16 %v2055
        %v2216 = vunpack.c.l.b16 %v2056
        %v2217 = vunpack.c.l.b16 %v2057
        %v2218 = vunpack.c.l.b16 %v2058
        %v2219 = vunpack.c.l.b16 %v2059
        %v2220 = vunpack.c.l.b16 %v2060
        %v2221 = vunpack.c.l.b16 %v2061
        %v2222 = vunpack.c.l.b16 %v2062
        %v2223 = vunpack.c.l.b16 %v2063
        %v2224 = vunpack.c.l.b16 %v2064
        %v2225 = vunpack.c.l.b16 %v2065
        %v2226 = vunpack.c.l.b16 %v2066
        %v2227 = vunpack.c.l.b16 %v2067
        %v2228 = vunpack.c.l.b16 %v2068
        %v2229 = vunpack.c.l.b16 %v2069
        %v2230 = vunpack.c.l.b16 %v2070
        %v2231 = vunpack.c.l.b16 %v2071
        %v2232 = vunpack.c.l.b16 %v2072
        %v2233 = vunpack.c.l.b16 %v2073
        %v2234 = vunpack.c.l.b16 %v2074
        %v2235 = vunpack.c.l.b16 %v2075
        %v2236 = vunpack.c.l.b16 %v2076
        %v2237 = vunpack.c.l.b16 %v2077
        %v2238 = vunpack.c.l.b16 %v2078
        %v2239 = vunpack.c.l.b16 %v2079
        %v2240 = vunpack.c.l.b16 %v2080
        %v2241 = vunpack.c.l.b16 %v2081
        %v2242 = vunpack.c.l.b16 %v2082
        %v2243 = vunpack.c.l.b16 %v2083
        %v2244 = vunpack.c.l.b16 %v2084
        %v2245 = vunpack.c.l.b16 %v2085
        %v2246 = vunpack.c.l.b16 %v2086
        %v2247 = vunpack.c.l.b16 %v2087
        %v2248 = vunpack.c.l.b16 %v2088
        %v2249 = vunpack.c.l.b16 %v2089
        %v2250 = vunpack.c.l.b16 %v2090
        %v2251 = vunpack.c.l.b16 %v2091
        %v2252 = vunpack.c.l.b16 %v2092
        %v2253 = vunpack.c.l.b16 %v2093
        %v2254 = vunpack.c.l.b16 %v2094
        %v2255 = vunpack.c.l.b16 %v2095
        %v2256 = vunpack.c.l.b16 %v2096
        %v2257 = vunpack.c.l.b16 %v2097
        %v2258 = vunpack.c.l.b16 %v2098
        %v2259 = vunpack.c.l.b16 %v2099
        %v2260 = vunpack.c.l.b16 %v2100
        %v2261 = vunpack.c.l.b16 %v2101
        %v2262 = vunpack.c.l.b16 %v2102
        %v2263 = vunpack.c.l.b16 %v2103
        %v2264 = vunpack.c.l.b16 %v2104
        %v2265 = vunpack.c.l.b16 %v2105
        %v2266 = vunpack.c.l.b16 %v2106
        %v2267 = vunpack.c.l.b16 %v2107
        %v2268 = vunpack.c.l.b16 %v2108
        %v2269 = vunpack.c.l.b16 %v2109
        %v2270 = vunpack.c.l.b16 %v2110
        %v2271 = vunpack.c.l.b16 %v2111
        %v2272 = vunpack.c.l.b16 %v2112
        %v2273 = vunpack.c.l.b16 %v2113
        %v2274 = vunpack.c.l.b16 %v2114
        %v2275 = vunpack.c.l.b16 %v2115
        %v2276 = vunpack.c.l.b16 %v2116
        %v2277 = vunpack.c.l.b16 %v2117
        %v2278 = vunpack.c.l.b16 %v2118
        %v2279 = vunpack.c.l.b16 %v2119
        %v2280 = vunpack.c.l.b16 %v2120
        %v2281 = vunpack.c.l.b16 %v2121
        %v2282 = vunpack.c.l.b16 %v2122
        %v2283 = vunpack.c.l.b16 %v2123
        %v2284 = vunpack.c.l.b16 %v2124
        %v2285 = vpack.c.b16 %v2206, %v2205
        %v2286 = vpack.c.b16 %v2208, %v2207
        %v2287 = vpack.c.b16 %v2210, %v2209
        %v2288 = vpack.c.b16 %v2212, %v2211
        %v2289 = vpack.c.b16 %v2214, %v2213
        %v2290 = vpack.c.b16 %v2216, %v2215
        %v2291 = vpack.c.b16 %v2218, %v2217
        %v2292 = vpack.c.b16 %v2220, %v2219
        %v2293 = vpack.c.b16 %v2222, %v2221
        %v2294 = vpack.c.b16 %v2224, %v2223
        %v2295 = vpack.c.b16 %v2226, %v2225
        %v2296 = vpack.c.b16 %v2228, %v2227
        %v2297 = vpack.c.b16 %v2230, %v2229
        %v2298 = vpack.c.b16 %v2232, %v2231
        %v2299 = vpack.c.b16 %v2234, %v2233
        %v2300 = vpack.c.b16 %v2236, %v2235
        %v2301 = vpack.c.b16 %v2238, %v2237
        %v2302 = vpack.c.b16 %v2240, %v2239
        %v2303 = vpack.c.b16 %v2242, %v2241
        %v2304 = vpack.c.b16 %v2244, %v2243
        %v2305 = vpack.c.b16 %v2246, %v2245
        %v2306 = vpack.c.b16 %v2248, %v2247
        %v2307 = vpack.c.b16 %v2250, %v2249
        %v2308 = vpack.c.b16 %v2252, %v2251
        %v2309 = vpack.c.b16 %v2254, %v2253
        %v2310 = vpack.c.b16 %v2256, %v2255
        %v2311 = vpack.c.b16 %v2258, %v2257
        %v2312 = vpack.c.b16 %v2260, %v2259
        %v2313 = vpack.c.b16 %v2262, %v2261
        %v2314 = vpack.c.b16 %v2264, %v2263
        %v2315 = vpack.c.b16 %v2266, %v2265
        %v2316 = vpack.c.b16 %v2268, %v2267
        %v2317 = vpack.c.b16 %v2270, %v2269
        %v2318 = vpack.c.b16 %v2272, %v2271
        %v2319 = vpack.c.b16 %v2274, %v2273
        %v2320 = vpack.c.b16 %v2276, %v2275
        %v2321 = vpack.c.b16 %v2278, %v2277
        %v2322 = vpack.c.b16 %v2280, %v2279
        %v2323 = vpack.c.b16 %v2282, %v2281
        %v2324 = vpack.c.b16 %v2284, %v2283
        %2365 = vmatprep.subr.bf16.mxu0 0
        %2366 = vmatpush1.bf16.msra.mxu0 %v2285
        %2367 = vmatprep.subr.bf16.mxu0 0
        %2368 = vmatpush1.bf16.msra.mxu0 %v2286
        %2369 = vmatprep.subr.bf16.mxu0 0
        %2370 = vmatpush1.bf16.msra.mxu0 %v2287
        %2371 = vmatprep.subr.bf16.mxu0 0
        %2372 = vmatpush1.bf16.msra.mxu0 %v2288
        %2373 = vmatprep.subr.bf16.mxu0 0
        %2374 = vmatpush1.bf16.msra.mxu0 %v2289
        %2375 = vmatprep.subr.bf16.mxu0 0
        %2376 = vmatpush1.bf16.msra.mxu0 %v2290
        %2377 = vmatprep.subr.bf16.mxu0 0
        %2378 = vmatpush1.bf16.msra.mxu0 %v2291
        %2379 = vmatprep.subr.bf16.mxu0 0
        %2380 = vmatpush1.bf16.msra.mxu0 %v2292
        %2381 = vmatprep.subr.bf16.mxu0 0
        %2382 = vmatpush1.bf16.msra.mxu0 %v2293
        %2383 = vmatprep.subr.bf16.mxu0 0
        %2384 = vmatpush1.bf16.msra.mxu0 %v2294
        %2385 = vmatprep.subr.bf16.mxu0 0
        %2386 = vmatpush1.bf16.msra.mxu0 %v2295
        %2387 = vmatprep.subr.bf16.mxu0 0
        %2388 = vmatpush1.bf16.msra.mxu0 %v2296
        %2389 = vmatprep.subr.bf16.mxu0 0
        %2390 = vmatpush1.bf16.msra.mxu0 %v2297
        %2391 = vmatprep.subr.bf16.mxu0 0
        %2392 = vmatpush1.bf16.msra.mxu0 %v2298
        %2393 = vmatprep.subr.bf16.mxu0 0
        %2394 = vmatpush1.bf16.msra.mxu0 %v2299
        %2395 = vmatprep.subr.bf16.mxu0 0
        %2396 = vmatpush1.bf16.msra.mxu0 %v2300
        %2397 = vmatprep.mubr.bf16.mxu0 %v2041
        %2398 = vmatmul.mubr.bf16.gmra.mrb[0].mxu0 %v2040
        %v2399 = vpop.f32.mrb[0].mxu0
        %v2400 = vadd.f32 0.0, %v2399
        %v2401 = vpop.f32.mrb[0].mxu0
        %v2402 = vpop.f32.mrb[0].mxu0
        %v2403 = vpop.f32.mrb[0].mxu0
        %2404 = vdwg.mxu0
        %2405 = vmatprep.subr.bf16.mxu0 0
        %2406 = vmatpush1.bf16.msra.mxu0 %v2301
        %2407 = vmatprep.subr.bf16.mxu0 0
        %2408 = vmatpush1.bf16.msra.mxu0 %v2302
        %2409 = vmatprep.subr.bf16.mxu0 0
        %2410 = vmatpush1.bf16.msra.mxu0 %v2303
        %2411 = vmatprep.subr.bf16.mxu0 0
        %2412 = vmatpush1.bf16.msra.mxu0 %v2304
        %2413 = vmatprep.subr.bf16.mxu0 0
        %2414 = vmatpush1.bf16.msra.mxu0 %v2305
        %2415 = vmatprep.subr.bf16.mxu0 0
        %2416 = vmatpush1.bf16.msra.mxu0 %v2306
        %2417 = vmatprep.subr.bf16.mxu0 0
        %2418 = vmatpush1.bf16.msra.mxu0 %v2307
        %2419 = vmatprep.subr.bf16.mxu0 0
        %2420 = vmatpush1.bf16.msra.mxu0 %v2308
        %2421 = vmatprep.subr.bf16.mxu0 0
        %2422 = vmatpush1.bf16.msra.mxu0 %v2309
        %2423 = vmatprep.subr.bf16.mxu0 0
        %2424 = vmatpush1.bf16.msra.mxu0 %v2310
        %2425 = vmatprep.subr.bf16.mxu0 0
        %2426 = vmatpush1.bf16.msra.mxu0 %v2311
        %2427 = vmatprep.subr.bf16.mxu0 0
        %2428 = vmatpush1.bf16.msra.mxu0 %v2312
        %2429 = vmatprep.subr.bf16.mxu0 0
        %2430 = vmatpush1.bf16.msra.mxu0 %v2313
        %2431 = vmatprep.subr.bf16.mxu0 0
        %2432 = vmatpush1.bf16.msra.mxu0 %v2314
        %2433 = vmatprep.subr.bf16.mxu0 0
        %2434 = vmatpush1.bf16.msra.mxu0 %v2315
        %2435 = vmatprep.subr.bf16.mxu0 0
        %2436 = vmatpush1.bf16.msra.mxu0 %v2316
        %2437 = vmatprep.mubr.bf16.mxu0 %v2043
        %2438 = vmatmul.mubr.bf16.gmra.mrb[0].mxu0 %v2042
        %v2439 = vpop.f32.mrb[0].mxu0
        %v2440 = vadd.f32 %v2400, %v2439
        %v2441 = vpop.f32.mrb[0].mxu0
        %v2442 = vpop.f32.mrb[0].mxu0
        %v2443 = vpop.f32.mrb[0].mxu0
        %2444 = vdwg.mxu0
        %2445 = vmatprep.subr.bf16.mxu0 0
        %2446 = vmatpush1.bf16.msra.mxu0 %v2317
        %2447 = vmatprep.subr.bf16.mxu0 0
        %2448 = vmatpush1.bf16.msra.mxu0 %v2318
        %2449 = vmatprep.subr.bf16.mxu0 0
        %2450 = vmatpush1.bf16.msra.mxu0 %v2319
        %2451 = vmatprep.subr.bf16.mxu0 0
        %2452 = vmatpush1.bf16.msra.mxu0 %v2320
        %2453 = vmatprep.subr.bf16.mxu0 0
        %2454 = vmatpush1.bf16.msra.mxu0 %v2321
        %2455 = vmatprep.subr.bf16.mxu0 0
        %2456 = vmatpush1.bf16.msra.mxu0 %v2322
        %2457 = vmatprep.subr.bf16.mxu0 0
        %2458 = vmatpush1.bf16.msra.mxu0 %v2323
        %2459 = vmatprep.subr.bf16.mxu0 0
        %2460 = vmatpush1.bf16.msra.mxu0 %v2324
        %2461 = vmatprep.subr.bf16.mxu0 0
        %2462 = vmatpush1.bf16.msra.mxu0 0
        %2463 = vmatprep.subr.bf16.mxu0 0
        %2464 = vmatpush1.bf16.msra.mxu0 0
        %2465 = vmatprep.subr.bf16.mxu0 0
        %2466 = vmatpush1.bf16.msra.mxu0 0
        %2467 = vmatprep.subr.bf16.mxu0 0
        %2468 = vmatpush1.bf16.msra.mxu0 0
        %2469 = vmatprep.subr.bf16.mxu0 0
        %2470 = vmatpush1.bf16.msra.mxu0 0
        %2471 = vmatprep.subr.bf16.mxu0 0
        %2472 = vmatpush1.bf16.msra.mxu0 0
        %2473 = vmatprep.subr.bf16.mxu0 0
        %2474 = vmatpush1.bf16.msra.mxu0 0
        %2475 = vmatprep.subr.bf16.mxu0 0
        %2476 = vmatpush1.bf16.msra.mxu0 0
        %2477 = vmatprep.mubr.bf16.mxu0 0
        %2478 = vmatmul.mubr.bf16.gmra.mrb[0].mxu0 %v2044
        %v2479 = vpop.f32.mrb[0].mxu0
        %v2480 = vadd.f32 %v2440, %v2479
        %v2481 = vpop.f32.mrb[0].mxu0
        %v2482 = vpop.f32.mrb[0].mxu0
        %v2483 = vpop.f32.mrb[0].mxu0
        %2484 = vdwg.mxu0
        %v2565 = vunpack.c.l.b16 %v1313
        %v2566 = vunpack.c.l.b16 %v1314
        %v2567 = vunpack.c.l.b16 %v1315
        %v2568 = vunpack.c.l.b16 %v1316
        %v2569 = vunpack.c.l.b16 %v1317
        %v2570 = vunpack.c.l.b16 %v1318
        %v2571 = vunpack.c.l.b16 %v1319
        %v2572 = vunpack.c.l.b16 %v1320
        %v2573 = vunpack.c.l.b16 %v1321
        %v2574 = vunpack.c.l.b16 %v1322
        %v2575 = vunpack.c.l.b16 %v1323
        %v2576 = vunpack.c.l.b16 %v1324
        %v2577 = vunpack.c.l.b16 %v1325
        %v2578 = vunpack.c.l.b16 %v1326
        %v2579 = vunpack.c.l.b16 %v1327
        %v2580 = vunpack.c.l.b16 %v1328
        %v2581 = vunpack.c.l.b16 %v1329
        %v2582 = vunpack.c.l.b16 %v1330
        %v2583 = vunpack.c.l.b16 %v1331
        %v2584 = vunpack.c.l.b16 %v1332
        %v2585 = vunpack.c.l.b16 %v1333
        %v2586 = vunpack.c.l.b16 %v1334
        %v2587 = vunpack.c.l.b16 %v1335
        %v2588 = vunpack.c.l.b16 %v1336
        %v2589 = vunpack.c.l.b16 %v1337
        %v2590 = vunpack.c.l.b16 %v1338
        %v2591 = vunpack.c.l.b16 %v1339
        %v2592 = vunpack.c.l.b16 %v1340
        %v2593 = vunpack.c.l.b16 %v1341
        %v2594 = vunpack.c.l.b16 %v1342
        %v2595 = vunpack.c.l.b16 %v1343
        %v2596 = vunpack.c.l.b16 %v1344
        %v2597 = vunpack.c.l.b16 %v1345
        %v2598 = vunpack.c.l.b16 %v1346
        %v2599 = vunpack.c.l.b16 %v1347
        %v2600 = vunpack.c.l.b16 %v1348
        %v2601 = vunpack.c.l.b16 %v1349
        %v2602 = vunpack.c.l.b16 %v1350
        %v2603 = vunpack.c.l.b16 %v1351
        %v2604 = vunpack.c.l.b16 %v1352
        %v2605 = vunpack.c.l.b16 %v1353
        %v2606 = vunpack.c.l.b16 %v1354
        %v2607 = vunpack.c.l.b16 %v1355
        %v2608 = vunpack.c.l.b16 %v1356
        %v2609 = vunpack.c.l.b16 %v1357
        %v2610 = vunpack.c.l.b16 %v1358
        %v2611 = vunpack.c.l.b16 %v1359
        %v2612 = vunpack.c.l.b16 %v1360
        %v2613 = vunpack.c.l.b16 %v1361
        %v2614 = vunpack.c.l.b16 %v1362
        %v2615 = vunpack.c.l.b16 %v1363
        %v2616 = vunpack.c.l.b16 %v1364
        %v2617 = vunpack.c.l.b16 %v1365
        %v2618 = vunpack.c.l.b16 %v1366
        %v2619 = vunpack.c.l.b16 %v1367
        %v2620 = vunpack.c.l.b16 %v1368
        %v2621 = vunpack.c.l.b16 %v1369
        %v2622 = vunpack.c.l.b16 %v1370
        %v2623 = vunpack.c.l.b16 %v1371
        %v2624 = vunpack.c.l.b16 %v1372
        %v2625 = vunpack.c.l.b16 %v1373
        %v2626 = vunpack.c.l.b16 %v1374
        %v2627 = vunpack.c.l.b16 %v1375
        %v2628 = vunpack.c.l.b16 %v1376
        %v2629 = vunpack.c.l.b16 %v1377
        %v2630 = vunpack.c.l.b16 %v1378
        %v2631 = vunpack.c.l.b16 %v1379
        %v2632 = vunpack.c.l.b16 %v1380
        %v2633 = vunpack.c.l.b16 %v1381
        %v2634 = vunpack.c.l.b16 %v1382
        %v2635 = vunpack.c.l.b16 %v1383
        %v2636 = vunpack.c.l.b16 %v1384
        %v2637 = vunpack.c.l.b16 %v1385
        %v2638 = vunpack.c.l.b16 %v1386
        %v2639 = vunpack.c.l.b16 %v1387
        %v2640 = vunpack.c.l.b16 %v1388
        %v2641 = vunpack.c.l.b16 %v1389
        %v2642 = vunpack.c.l.b16 %v1390
        %v2643 = vunpack.c.l.b16 %v1391
        %v2644 = vunpack.c.l.b16 %v1392
        %v2645 = vpack.c.b16 %v2566, %v2565
        %v2646 = vpack.c.b16 %v2568, %v2567
        %v2647 = vpack.c.b16 %v2570, %v2569
        %v2648 = vpack.c.b16 %v2572, %v2571
        %v2649 = vpack.c.b16 %v2574, %v2573
        %v2650 = vpack.c.b16 %v2576, %v2575
        %v2651 = vpack.c.b16 %v2578, %v2577
        %v2652 = vpack.c.b16 %v2580, %v2579
        %v2653 = vpack.c.b16 %v2582, %v2581
        %v2654 = vpack.c.b16 %v2584, %v2583
        %v2655 = vpack.c.b16 %v2586, %v2585
        %v2656 = vpack.c.b16 %v2588, %v2587
        %v2657 = vpack.c.b16 %v2590, %v2589
        %v2658 = vpack.c.b16 %v2592, %v2591
        %v2659 = vpack.c.b16 %v2594, %v2593
        %v2660 = vpack.c.b16 %v2596, %v2595
        %v2661 = vpack.c.b16 %v2598, %v2597
        %v2662 = vpack.c.b16 %v2600, %v2599
        %v2663 = vpack.c.b16 %v2602, %v2601
        %v2664 = vpack.c.b16 %v2604, %v2603
        %v2665 = vpack.c.b16 %v2606, %v2605
        %v2666 = vpack.c.b16 %v2608, %v2607
        %v2667 = vpack.c.b16 %v2610, %v2609
        %v2668 = vpack.c.b16 %v2612, %v2611
        %v2669 = vpack.c.b16 %v2614, %v2613
        %v2670 = vpack.c.b16 %v2616, %v2615
        %v2671 = vpack.c.b16 %v2618, %v2617
        %v2672 = vpack.c.b16 %v2620, %v2619
        %v2673 = vpack.c.b16 %v2622, %v2621
        %v2674 = vpack.c.b16 %v2624, %v2623
        %v2675 = vpack.c.b16 %v2626, %v2625
        %v2676 = vpack.c.b16 %v2628, %v2627
        %v2677 = vpack.c.b16 %v2630, %v2629
        %v2678 = vpack.c.b16 %v2632, %v2631
        %v2679 = vpack.c.b16 %v2634, %v2633
        %v2680 = vpack.c.b16 %v2636, %v2635
        %v2681 = vpack.c.b16 %v2638, %v2637
        %v2682 = vpack.c.b16 %v2640, %v2639
        %v2683 = vpack.c.b16 %v2642, %v2641
        %v2684 = vpack.c.b16 %v2644, %v2643
        %2725 = vmatprep.subr.bf16.mxu0 0
        %2726 = vmatpush1.bf16.msra.mxu0 %v2645
        %2727 = vmatprep.subr.bf16.mxu0 0
        %2728 = vmatpush1.bf16.msra.mxu0 %v2646
        %2729 = vmatprep.subr.bf16.mxu0 0
        %2730 = vmatpush1.bf16.msra.mxu0 %v2647
        %2731 = vmatprep.subr.bf16.mxu0 0
        %2732 = vmatpush1.bf16.msra.mxu0 %v2648
        %2733 = vmatprep.subr.bf16.mxu0 0
        %2734 = vmatpush1.bf16.msra.mxu0 %v2649
        %2735 = vmatprep.subr.bf16.mxu0 0
        %2736 = vmatpush1.bf16.msra.mxu0 %v2650
        %2737 = vmatprep.subr.bf16.mxu0 0
        %2738 = vmatpush1.bf16.msra.mxu0 %v2651
        %2739 = vmatprep.subr.bf16.mxu0 0
        %2740 = vmatpush1.bf16.msra.mxu0 %v2652
        %2741 = vmatprep.subr.bf16.mxu0 0
        %2742 = vmatpush1.bf16.msra.mxu0 %v2653
        %2743 = vmatprep.subr.bf16.mxu0 0
        %2744 = vmatpush1.bf16.msra.mxu0 %v2654
        %2745 = vmatprep.subr.bf16.mxu0 0
        %2746 = vmatpush1.bf16.msra.mxu0 %v2655
        %2747 = vmatprep.subr.bf16.mxu0 0
        %2748 = vmatpush1.bf16.msra.mxu0 %v2656
        %2749 = vmatprep.subr.bf16.mxu0 0
        %2750 = vmatpush1.bf16.msra.mxu0 %v2657
        %2751 = vmatprep.subr.bf16.mxu0 0
        %2752 = vmatpush1.bf16.msra.mxu0 %v2658
        %2753 = vmatprep.subr.bf16.mxu0 0
        %2754 = vmatpush1.bf16.msra.mxu0 %v2659
        %2755 = vmatprep.subr.bf16.mxu0 0
        %2756 = vmatpush1.bf16.msra.mxu0 %v2660
        %2757 = vmatprep.mubr.bf16.mxu0 %v1309
        %2758 = vmatmul.mubr.bf16.gmra.mrb[0].mxu0 %v1308
        %v2759 = vpop.f32.mrb[0].mxu0
        %v2760 = vadd.f32 %v2480, %v2759
        %v2761 = vpop.f32.mrb[0].mxu0
        %v2762 = vpop.f32.mrb[0].mxu0
        %v2763 = vpop.f32.mrb[0].mxu0
        %2764 = vdwg.mxu0
        %2765 = vmatprep.subr.bf16.mxu0 0
        %2766 = vmatpush1.bf16.msra.mxu0 %v2661
        %2767 = vmatprep.subr.bf16.mxu0 0
        %2768 = vmatpush1.bf16.msra.mxu0 %v2662
        %2769 = vmatprep.subr.bf16.mxu0 0
        %2770 = vmatpush1.bf16.msra.mxu0 %v2663
        %2771 = vmatprep.subr.bf16.mxu0 0
        %2772 = vmatpush1.bf16.msra.mxu0 %v2664
        %2773 = vmatprep.subr.bf16.mxu0 0
        %2774 = vmatpush1.bf16.msra.mxu0 %v2665
        %2775 = vmatprep.subr.bf16.mxu0 0
        %2776 = vmatpush1.bf16.msra.mxu0 %v2666
        %2777 = vmatprep.subr.bf16.mxu0 0
        %2778 = vmatpush1.bf16.msra.mxu0 %v2667
        %2779 = vmatprep.subr.bf16.mxu0 0
        %2780 = vmatpush1.bf16.msra.mxu0 %v2668
        %2781 = vmatprep.subr.bf16.mxu0 0
        %2782 = vmatpush1.bf16.msra.mxu0 %v2669
        %2783 = vmatprep.subr.bf16.mxu0 0
        %2784 = vmatpush1.bf16.msra.mxu0 %v2670
        %2785 = vmatprep.subr.bf16.mxu0 0
        %2786 = vmatpush1.bf16.msra.mxu0 %v2671
        %2787 = vmatprep.subr.bf16.mxu0 0
        %2788 = vmatpush1.bf16.msra.mxu0 %v2672
        %2789 = vmatprep.subr.bf16.mxu0 0
        %2790 = vmatpush1.bf16.msra.mxu0 %v2673
        %2791 = vmatprep.subr.bf16.mxu0 0
        %2792 = vmatpush1.bf16.msra.mxu0 %v2674
        %2793 = vmatprep.subr.bf16.mxu0 0
        %2794 = vmatpush1.bf16.msra.mxu0 %v2675
        %2795 = vmatprep.subr.bf16.mxu0 0
        %2796 = vmatpush1.bf16.msra.mxu0 %v2676
        %2797 = vmatprep.mubr.bf16.mxu0 %v1311
        %2798 = vmatmul.mubr.bf16.gmra.mrb[0].mxu0 %v1310
        %v2799 = vpop.f32.mrb[0].mxu0
        %v2800 = vadd.f32 %v2760, %v2799
        %v2801 = vpop.f32.mrb[0].mxu0
        %v2802 = vpop.f32.mrb[0].mxu0
        %v2803 = vpop.f32.mrb[0].mxu0
        %2804 = vdwg.mxu0
        %2805 = vmatprep.subr.bf16.mxu0 0
        %2806 = vmatpush1.bf16.msra.mxu0 %v2677
        %2807 = vmatprep.subr.bf16.mxu0 0
        %2808 = vmatpush1.bf16.msra.mxu0 %v2678
        %2809 = vmatprep.subr.bf16.mxu0 0
        %2810 = vmatpush1.bf16.msra.mxu0 %v2679
        %2811 = vmatprep.subr.bf16.mxu0 0
        %2812 = vmatpush1.bf16.msra.mxu0 %v2680
        %2813 = vmatprep.subr.bf16.mxu0 0
        %2814 = vmatpush1.bf16.msra.mxu0 %v2681
        %2815 = vmatprep.subr.bf16.mxu0 0
        %2816 = vmatpush1.bf16.msra.mxu0 %v2682
        %2817 = vmatprep.subr.bf16.mxu0 0
        %2818 = vmatpush1.bf16.msra.mxu0 %v2683
        %2819 = vmatprep.subr.bf16.mxu0 0
        %2820 = vmatpush1.bf16.msra.mxu0 %v2684
        %2821 = vmatprep.subr.bf16.mxu0 0
        %2822 = vmatpush1.bf16.msra.mxu0 0
        %2823 = vmatprep.subr.bf16.mxu0 0
        %2824 = vmatpush1.bf16.msra.mxu0 0
        %2825 = vmatprep.subr.bf16.mxu0 0
        %2826 = vmatpush1.bf16.msra.mxu0 0
        %2827 = vmatprep.subr.bf16.mxu0 0
        %2828 = vmatpush1.bf16.msra.mxu0 0
        %2829 = vmatprep.subr.bf16.mxu0 0
        %2830 = vmatpush1.bf16.msra.mxu0 0
        %2831 = vmatprep.subr.bf16.mxu0 0
        %2832 = vmatpush1.bf16.msra.mxu0 0
        %2833 = vmatprep.subr.bf16.mxu0 0
        %2834 = vmatpush1.bf16.msra.mxu0 0
        %2835 = vmatprep.subr.bf16.mxu0 0
        %2836 = vmatpush1.bf16.msra.mxu0 0
        %2837 = vmatprep.mubr.bf16.mxu0 0
        %2838 = vmatmul.mubr.bf16.gmra.mrb[0].mxu0 %v1312
        %v2839 = vpop.f32.mrb[0].mxu0
        %v2840 = vadd.f32 %v2800, %v2839
        %v2841 = vpop.f32.mrb[0].mxu0
        %v2842 = vpop.f32.mrb[0].mxu0
        %v2843 = vpop.f32.mrb[0].mxu0
        %2844 = vdwg.mxu0
        %v2845 = vmul.f32 %v2840, 0.015625
        %v2846 = vld [vmem:[%s8] sm:$0x1]
        %v2847 = vadd.f32 %v2845, %v2846
        %2848 = vst [vmem:[%s324] sm:$0x1] %v2847
        %s2849 = sand.u32 %s225, 1
        %s2850 = scalar_lea.sflag [#allocation3], %s2849
        %s2851 = sand.u32 %s225, 1
        %s2852 = scalar_lea.vmem [#allocation2], %s2851
        // Predicated region
        $region57: #{_cnn_forward_impl.1} parent=55 // pred_check
          %p2853 = pneg %p235
        $region58: #{_cnn_forward_impl.1} parent=55 // pred_check_branch
          %2855 = sbr.rel (%p2853) target = $region60
        $region59: #{_cnn_forward_impl.1} parent=55 // pred_region
          %s2857 = ssub.s32 16, 16
          %2858 = vsyncadd %s2850, %s2857
          %s2859 = smul.addr %s23, 16
          %s2860 = scalar_lea.hbm %s9, %s2859
          %s2862 = sshll.u32 %s2852, 4
          %s2863 = int_to_ptr.vmem [resolvable:$true] %s2862
          %2865 = dma.vmem_to_hbm [thread:$0]  %s2863, 16, %s2860, %s2850
        $region60: #{_cnn_forward_impl.1} parent=55 // pred_fallthru
          _
      $region56: #{_cnn_forward_impl.1} parent=5 // pred_fallthru
        _
      %p2866 = scmp.le.s32.totalorder 2, %s18
      // Predicated region
      $region61: #{_cnn_forward_impl.1} parent=5 // pred_check
        %p2867 = pneg %p2866
      $region62: #{_cnn_forward_impl.1} parent=5 // pred_check_branch
        %2869 = sbr.rel (%p2867) target = $region64
      $region63: #{_cnn_forward_impl.1} parent=5 // pred_region
        %s2870 = ssub.s32 %s18, 2
        // Predicated region
        $region65: #{_cnn_forward_impl.1} parent=63 // pred_check
          %p2871 = pneg %p241
        $region66: #{_cnn_forward_impl.1} parent=63 // pred_check_branch
          %2873 = sbr.rel (%p2871) target = $region68
        $region67: #{_cnn_forward_impl.1} parent=63 // pred_region
          %s2874 = sand.u32 %s226, 1
          %s2875 = scalar_lea.sflag [#allocation3], %s2874
          %s2876 = sand.u32 %s226, 1
          %s2877 = scalar_lea.vmem [#allocation2], %s2876
          %2878 = dma.done %s2875, 16
        $region68: #{_cnn_forward_impl.1} parent=63 // pred_fallthru
          _
      $region64: #{_cnn_forward_impl.1} parent=5 // pred_fallthru
        _
    $region6: #{_cnn_forward_impl.1} parent=1 // loop_footer
      %s22 = sadd.s32 1, %s18
    $region7: #{_cnn_forward_impl.1} parent=1 // loop_footer_branch
      %17 = sbr.rel target = $region3
    $region8: #{_cnn_forward_impl.1} parent=1 // loop_exit
      _
    %2879 = vsyncpa [#allocation3], 1
    %s2880 = scalar_lea.sflag [#allocation3], 1
    %2881 = vsyncpa %s2880, 1

</llo_original>
